<compile_context>
chip_gen: v5e
topology: v5e:2x2
jax: 0.10.0
libtpu: 0.0.40
codegen_flags: <defaults>
</compile_context>

<pallas_src>
import math
from functools import partial

import jax
import jax.numpy as jnp
from jax.experimental import pallas as pl
from jax.experimental.pallas import tpu as pltpu


# ------------------------------- helpers -------------------------------------

_PER_BLOCK_ARGS = 12  # ln1_w, ln1_b, wqkv, bqkv, wo, bo, ln2_w, ln2_b, w1, b1, w2, b2


def _gelu_tanh(x):
    # tanh-approximate GELU, computed in f32.
    # TODO(synk): on v6e/v7x the EUP has bf16 throughput; a generation-gated
    # bf16 GELU would halve the transcendental cost there (kept f32 for accuracy).
    c = math.sqrt(2.0 / math.pi)
    return 0.5 * x * (1.0 + jnp.tanh(c * (x + 0.044715 * x * x * x)))


def _layernorm(x, w, b, eps=1e-5):
    # Two-pass LayerNorm (mean, then centered variance): avoids the
    # catastrophic-cancellation risk of var = E[x^2] - mu^2.
    mu = jnp.mean(x, axis=-1, keepdims=True)
    xc = x - mu
    var = jnp.mean(xc * xc, axis=-1, keepdims=True)
    return xc * jax.lax.rsqrt(var + eps) * w + b


def _weight_spec(shape):
    # Grid-invariant operand: its block index never changes across the grid,
    # so a single VMEM buffer suffices (no double-buffering of weights).
    return pl.BlockSpec(shape, lambda *_: (0,) * len(shape),
                        pipeline_mode=pl.Buffered(1))


def _vmem_capacity_bytes():
    # Generation-aware VMEM capacity (128 MiB on v5e/v6e, 64 MiB on v7x).
    try:
        return int(pltpu.get_tpu_info().vmem_capacity_bytes)
    except Exception:
        return 64 << 20  # conservative (v7x-sized) fallback


def _compiler_params(io_bytes, weight_bytes, interm_bytes, vmem_cap):
    # 2x activation tiles (double-buffered pipeline) + 1x single-buffered
    # weights + live in-kernel intermediates + scratch margin, capped by the
    # actual chip capacity (not a flat 64 MiB clamp).
    need = 2 * io_bytes + weight_bytes + interm_bytes + (4 << 20)
    limit = int(min(max(need, 32 << 20), int(0.9 * vmem_cap)))
    return pltpu.CompilerParams(
        dimension_semantics=("parallel",),
        vmem_limit_bytes=limit,
    )


# ------------------------------- kernel ---------------------------------------


def _block_body(x, ln1_w, ln1_b, wqkv, bqkv, wo, bo,
                ln2_w, ln2_b, w1, b1, w2, b2, *, num_head):
    """One pre-norm ViT encoder block on an (S, D) f32 sequence (all in VMEM)."""
    S, D = x.shape
    H = num_head
    Dh = D // H
    scale = 1.0 / math.sqrt(Dh)
    bf16 = jnp.bfloat16

    # ---- LayerNorm1 + fused QKV projection: one (S, D) @ (D, 3D) matmul ----
    xn = _layernorm(x, ln1_w, ln1_b)
    qkv = jnp.dot(xn.astype(bf16), wqkv,
                  preferred_element_type=jnp.float32) + bqkv        # (S, 3D) f32
    qkv = qkv.astype(bf16)

    # ---- per-head softmax attention + head-wise output projection ----
    # Heads are static lane slices of the fused QKV slab; the concat over heads
    # is folded into the output projection, accumulated in f32.
    # TODO(synk): for very long sequences, tile KV with an online softmax so the
    # per-head (S, S) score block stays bounded in VMEM (matters most on v7x).
    ctx = jnp.zeros((S, D), jnp.float32)
    for h in range(H):
        qh = qkv[:, h * Dh:(h + 1) * Dh]
        kh = qkv[:, D + h * Dh:D + (h + 1) * Dh]
        vh = qkv[:, 2 * D + h * Dh:2 * D + (h + 1) * Dh]
        # contract the last dim of both operands -> no materialized K^T
        s = jax.lax.dot_general(qh, kh, (((1,), (1,)), ((), ())),
                                preferred_element_type=jnp.float32) * scale
        s = s - jnp.max(s, axis=-1, keepdims=True)
        p = jnp.exp(s)
        p = p * pl.reciprocal(jnp.sum(p, axis=-1, keepdims=True), approx=True)
        oh = jnp.dot(p.astype(bf16), vh, preferred_element_type=jnp.float32)
        ctx = ctx + jnp.dot(oh.astype(bf16), wo[h * Dh:(h + 1) * Dh, :],
                            preferred_element_type=jnp.float32)
    y = x + ctx + bo

    # ---- LayerNorm2 + MLP + residual ----
    # TODO(synk): dropout_p is ignored (inference-mode identity).
    yn = _layernorm(y, ln2_w, ln2_b)
    h1 = jnp.dot(yn.astype(bf16), w1, preferred_element_type=jnp.float32) + b1
    h1 = _gelu_tanh(h1)
    # TODO(synk): for production-sized M on v7x (64 MiB VMEM), chunk the hidden
    # dim with a fori_loop so the f32 (S, M) intermediate stays bounded.
    mlp = jnp.dot(h1.astype(bf16), w2, preferred_element_type=jnp.float32) + b2
    return y + mlp


def fused_blocks_kernel(*refs, num_blocks, num_head):
    """Runs `num_blocks` fused encoder blocks on one batch's (S, D) sequence.

    refs = (x_ref, <12 weight refs per block>..., o_ref)
    """
    x_ref = refs[0]
    o_ref = refs[-1]
    w_refs = refs[1:-1]

    x = x_ref[0].astype(jnp.float32)                       # (S, D)
    for blk in range(num_blocks):
        ws = [r[...] for r in
              w_refs[blk * _PER_BLOCK_ARGS:(blk + 1) * _PER_BLOCK_ARGS]]
        x = _block_body(x, *ws, num_head=num_head)
    o_ref[0] = x.astype(o_ref.dtype)


# ------------------------------- wrappers -------------------------------------


def _prepare_block_args(p):
    # Fuse Q/K/V weights into one (D, 3D) bf16 operand (and biases into (1, 3D)).
    wqkv = jnp.concatenate([p["wq"], p["wk"], p["wv"]], axis=1)
    bqkv = jnp.concatenate([p["bq"], p["bk"], p["bv"]], axis=1)
    return (p["ln1_w"], p["ln1_b"], wqkv, bqkv, p["wo"], p["bo"],
            p["ln2_w"], p["ln2_b"], p["w1"], p["b1"], p["w2"], p["b2"])


def _args_bytes(args):
    return sum(int(a.size) * a.dtype.itemsize for a in args)


def _fused_chunk_call(x, chunk_args, num_head):
    """One pallas_call running len(chunk_args) encoder blocks back to back."""
    B, S, D = x.shape
    nb = len(chunk_args)
    M = max(a[8].shape[1] for a in chunk_args)             # w1 is (D, M)

    flat_args = []
    in_specs = [pl.BlockSpec((1, S, D), lambda b: (b, 0, 0))]
    for args in chunk_args:
        for a in args:
            flat_args.append(a)
            in_specs.append(_weight_spec(a.shape))

    io_bytes = 2 * S * D * x.dtype.itemsize                # in tile + out tile
    weight_bytes = _args_bytes(flat_args)
    # live in-kernel intermediates: qkv (f32 + bf16), one (S, S) score block,
    # h1 (S, M) f32, a few (S, D) f32 temporaries
    interm_bytes = S * (3 * D * 6 + S * 4 + M * 4 + 6 * D * 4)

    kernel = partial(fused_blocks_kernel, num_blocks=nb, num_head=num_head)
    return pl.pallas_call(
        kernel,
        out_shape=jax.ShapeDtypeStruct((B, S, D), x.dtype),
        grid=(B,),
        in_specs=in_specs,
        out_specs=pl.BlockSpec((1, S, D), lambda b: (b, 0, 0)),
        compiler_params=_compiler_params(io_bytes, weight_bytes, interm_bytes,
                                         _vmem_capacity_bytes()),
    )(x, *flat_args)


def vit_encoder(x, block_params, num_head):
    """x: (B, S, D) float32; block_params: list of per-block param dicts."""
    B, S, D = x.shape
    assert D % num_head == 0

    prepared = [_prepare_block_args(p) for p in block_params]

    # Fuse as many consecutive blocks per pallas_call as the generation's VMEM
    # weight budget allows (at small configs: the whole encoder in one launch,
    # so the residual stream never crosses HBM between blocks).
    budget = int(0.55 * _vmem_capacity_bytes())
    chunks, cur, cur_bytes = [], [], 0
    for args in prepared:
        wb = _args_bytes(args)
        if cur and cur_bytes + wb > budget:
            chunks.append(cur)
            cur, cur_bytes = [], 0
        cur.append(args)
        cur_bytes += wb
    if cur:
        chunks.append(cur)

    # TODO(synk): when the encoder spans multiple chunks, the next chunk's
    # weights could be prefetched cross-call (P10) while this chunk computes
    # (hides weight HBM streaming on v5e); kept sequential here.
    for chunk in chunks:
        x = _fused_chunk_call(x, chunk, num_head)
    return x


# --------------------------- pure-JAX reference --------------------------------


def _ref_block(x, p, num_head):
    B, S, D = x.shape
    H = num_head
    Dh = D // H
    f32 = lambda t: t.astype(jnp.float32)

    def ln(z, w, b):
        mu = jnp.mean(z, -1, keepdims=True)
        var = jnp.mean((z - mu) ** 2, -1, keepdims=True)
        return (z - mu) / jnp.sqrt(var + 1e-5) * w + b

    xn = ln(x, p["ln1_w"][0], p["ln1_b"][0])
    q = xn @ f32(p["wq"]) + p["bq"][0]
    k = xn @ f32(p["wk"]) + p["bk"][0]
    v = xn @ f32(p["wv"]) + p["bv"][0]
    q = q.reshape(B, S, H, Dh).transpose(0, 2, 1, 3)
    k = k.reshape(B, S, H, Dh).transpose(0, 2, 1, 3)
    v = v.reshape(B, S, H, Dh).transpose(0, 2, 1, 3)
    s = jnp.einsum("bhqd,bhkd->bhqk", q, k) / math.sqrt(Dh)
    a = jax.nn.softmax(s, axis=-1)
    o = jnp.einsum("bhqk,bhkd->bhqd", a, v).transpose(0, 2, 1, 3).reshape(B, S, D)
    y = x + (o @ f32(p["wo"]) + p["bo"][0])

    yn = ln(y, p["ln2_w"][0], p["ln2_b"][0])
    h1 = jax.nn.gelu(yn @ f32(p["w1"]) + p["b1"][0], approximate=True)
    return y + (h1 @ f32(p["w2"]) + p["b2"][0])


# ---------------------------------- main ---------------------------------------


def init_block_params(key, D, M):
    ks = jax.random.split(key, 10)
    s = 0.02
    bf16 = jnp.bfloat16
    nrm = lambda k, shape: s * jax.random.normal(k, shape, jnp.float32)
    return {
        "ln1_w": jnp.ones((1, D), jnp.float32),
        "ln1_b": jnp.zeros((1, D), jnp.float32),
        "wq": nrm(ks[0], (D, D)).astype(bf16), "bq": nrm(ks[1], (1, D)),
        "wk": nrm(ks[2], (D, D)).astype(bf16), "bk": nrm(ks[3], (1, D)),
        "wv": nrm(ks[4], (D, D)).astype(bf16), "bv": nrm(ks[5], (1, D)),
        "wo": nrm(ks[6], (D, D)).astype(bf16), "bo": jnp.zeros((1, D), jnp.float32),
        "ln2_w": jnp.ones((1, D), jnp.float32),
        "ln2_b": jnp.zeros((1, D), jnp.float32),
        "w1": nrm(ks[7], (D, M)).astype(bf16), "b1": nrm(ks[8], (1, M)),
        "w2": nrm(ks[9], (M, D)).astype(bf16), "b2": jnp.zeros((1, D), jnp.float32),
    }


if __name__ == "__main__":
    # Small config: num_blocks=2, num_head=4, embed_dim=32, mpl_dim=64, dropout_p=0.0
    NUM_BLOCKS, NUM_HEAD, EMBED, MLP = 2, 4, 32, 64
    B, S = 2, 8

    root = jax.random.PRNGKey(0)
    kx, kp = jax.random.split(root)
    x = jax.random.normal(kx, (B, S, EMBED), jnp.float32)

    block_keys = jax.random.split(kp, NUM_BLOCKS)
    params = [init_block_params(block_keys[i], EMBED, MLP)
              for i in range(NUM_BLOCKS)]

    run = jax.jit(partial(vit_encoder, num_head=NUM_HEAD))
    out = jax.block_until_ready(run(x, params))

    # pure-JAX reference: f32 math on the same (bf16-rounded) weights
    ref = x
    for p in params:
        ref = _ref_block(ref, p, NUM_HEAD)

    assert out.shape == (B, S, EMBED)
    max_err = float(jnp.max(jnp.abs(out - ref)))
    # bf16 matmul operands in the kernel -> looser tolerance than pure f32
    assert jnp.allclose(out, ref, atol=2e-2, rtol=2e-2), (
        f"mismatch vs reference (max abs err {max_err:.4e})")
    print("KERNEL_OK")
</pallas_src>

<mosaic_0001>
module attributes {stable_mosaic.version = 11 : i64} {
  func.func @fused_blocks_kernel(%arg0: i32, %arg1: memref<1x8x32xf32, #tpu.memory_space<vmem>>, %arg2: memref<1x32xf32, #tpu.memory_space<vmem>>, %arg3: memref<1x32xf32, #tpu.memory_space<vmem>>, %arg4: memref<32x96xbf16, #tpu.memory_space<vmem>>, %arg5: memref<1x96xf32, #tpu.memory_space<vmem>>, %arg6: memref<32x32xbf16, #tpu.memory_space<vmem>>, %arg7: memref<1x32xf32, #tpu.memory_space<vmem>>, %arg8: memref<1x32xf32, #tpu.memory_space<vmem>>, %arg9: memref<1x32xf32, #tpu.memory_space<vmem>>, %arg10: memref<32x64xbf16, #tpu.memory_space<vmem>>, %arg11: memref<1x64xf32, #tpu.memory_space<vmem>>, %arg12: memref<64x32xbf16, #tpu.memory_space<vmem>>, %arg13: memref<1x32xf32, #tpu.memory_space<vmem>>, %arg14: memref<1x32xf32, #tpu.memory_space<vmem>>, %arg15: memref<1x32xf32, #tpu.memory_space<vmem>>, %arg16: memref<32x96xbf16, #tpu.memory_space<vmem>>, %arg17: memref<1x96xf32, #tpu.memory_space<vmem>>, %arg18: memref<32x32xbf16, #tpu.memory_space<vmem>>, %arg19: memref<1x32xf32, #tpu.memory_space<vmem>>, %arg20: memref<1x32xf32, #tpu.memory_space<vmem>>, %arg21: memref<1x32xf32, #tpu.memory_space<vmem>>, %arg22: memref<32x64xbf16, #tpu.memory_space<vmem>>, %arg23: memref<1x64xf32, #tpu.memory_space<vmem>>, %arg24: memref<64x32xbf16, #tpu.memory_space<vmem>>, %arg25: memref<1x32xf32, #tpu.memory_space<vmem>>, %arg26: memref<1x8x32xf32, #tpu.memory_space<vmem>>) attributes {dimension_semantics = [#tpu.dimension_semantics<parallel>], iteration_bounds = array<i64: 2>, scalar_prefetch = 0 : i64, scratch_operands = 0 : i64, tpu.core_type = #tpu.core_type<tc>, window_params = [{transform_indices = @transform_0, window_bounds = array<i64: 1, 8, 32>}, {pipeline_mode = #tpu.pipeline_mode<synchronous>, transform_indices = @transform_1, window_bounds = array<i64: 1, 32>}, {pipeline_mode = #tpu.pipeline_mode<synchronous>, transform_indices = @transform_2, window_bounds = array<i64: 1, 32>}, {pipeline_mode = #tpu.pipeline_mode<synchronous>, transform_indices = @transform_3, window_bounds = array<i64: 32, 96>}, {pipeline_mode = #tpu.pipeline_mode<synchronous>, transform_indices = @transform_4, window_bounds = array<i64: 1, 96>}, {pipeline_mode = #tpu.pipeline_mode<synchronous>, transform_indices = @transform_5, window_bounds = array<i64: 32, 32>}, {pipeline_mode = #tpu.pipeline_mode<synchronous>, transform_indices = @transform_6, window_bounds = array<i64: 1, 32>}, {pipeline_mode = #tpu.pipeline_mode<synchronous>, transform_indices = @transform_7, window_bounds = array<i64: 1, 32>}, {pipeline_mode = #tpu.pipeline_mode<synchronous>, transform_indices = @transform_8, window_bounds = array<i64: 1, 32>}, {pipeline_mode = #tpu.pipeline_mode<synchronous>, transform_indices = @transform_9, window_bounds = array<i64: 32, 64>}, {pipeline_mode = #tpu.pipeline_mode<synchronous>, transform_indices = @transform_10, window_bounds = array<i64: 1, 64>}, {pipeline_mode = #tpu.pipeline_mode<synchronous>, transform_indices = @transform_11, window_bounds = array<i64: 64, 32>}, {pipeline_mode = #tpu.pipeline_mode<synchronous>, transform_indices = @transform_12, window_bounds = array<i64: 1, 32>}, {pipeline_mode = #tpu.pipeline_mode<synchronous>, transform_indices = @transform_13, window_bounds = array<i64: 1, 32>}, {pipeline_mode = #tpu.pipeline_mode<synchronous>, transform_indices = @transform_14, window_bounds = array<i64: 1, 32>}, {pipeline_mode = #tpu.pipeline_mode<synchronous>, transform_indices = @transform_15, window_bounds = array<i64: 32, 96>}, {pipeline_mode = #tpu.pipeline_mode<synchronous>, transform_indices = @transform_16, window_bounds = array<i64: 1, 96>}, {pipeline_mode = #tpu.pipeline_mode<synchronous>, transform_indices = @transform_17, window_bounds = array<i64: 32, 32>}, {pipeline_mode = #tpu.pipeline_mode<synchronous>, transform_indices = @transform_18, window_bounds = array<i64: 1, 32>}, {pipeline_mode = #tpu.pipeline_mode<synchronous>, transform_indices = @transform_19, window_bounds = array<i64: 1, 32>}, {pipeline_mode = #tpu.pipeline_mode<synchronous>, transform_indices = @transform_20, window_bounds = array<i64: 1, 32>}, {pipeline_mode = #tpu.pipeline_mode<synchronous>, transform_indices = @transform_21, window_bounds = array<i64: 32, 64>}, {pipeline_mode = #tpu.pipeline_mode<synchronous>, transform_indices = @transform_22, window_bounds = array<i64: 1, 64>}, {pipeline_mode = #tpu.pipeline_mode<synchronous>, transform_indices = @transform_23, window_bounds = array<i64: 64, 32>}, {pipeline_mode = #tpu.pipeline_mode<synchronous>, transform_indices = @transform_24, window_bounds = array<i64: 1, 32>}, {transform_indices = @transform_25, window_bounds = array<i64: 1, 8, 32>}]} {
    %c0 = arith.constant 0 : index
    %c0_0 = arith.constant 0 : index
    %c0_1 = arith.constant 0 : index
    %0 = vector.load %arg1[%c0, %c0_0, %c0_1] : memref<1x8x32xf32, #tpu.memory_space<vmem>>, vector<1x8x32xf32>
    %1 = vector.shape_cast %0 : vector<1x8x32xf32> to vector<8x32xf32>
    %c0_2 = arith.constant 0 : index
    %c0_3 = arith.constant 0 : index
    %2 = vector.load %arg2[%c0_2, %c0_3] : memref<1x32xf32, #tpu.memory_space<vmem>>, vector<1x32xf32>
    %c0_4 = arith.constant 0 : index
    %c0_5 = arith.constant 0 : index
    %3 = vector.load %arg3[%c0_4, %c0_5] : memref<1x32xf32, #tpu.memory_space<vmem>>, vector<1x32xf32>
    %c0_6 = arith.constant 0 : index
    %c0_7 = arith.constant 0 : index
    %4 = vector.load %arg4[%c0_6, %c0_7] : memref<32x96xbf16, #tpu.memory_space<vmem>>, vector<32x96xbf16>
    %c0_8 = arith.constant 0 : index
    %c0_9 = arith.constant 0 : index
    %5 = vector.load %arg5[%c0_8, %c0_9] : memref<1x96xf32, #tpu.memory_space<vmem>>, vector<1x96xf32>
    %c0_10 = arith.constant 0 : index
    %c0_11 = arith.constant 0 : index
    %6 = vector.load %arg6[%c0_10, %c0_11] : memref<32x32xbf16, #tpu.memory_space<vmem>>, vector<32x32xbf16>
    %c0_12 = arith.constant 0 : index
    %c0_13 = arith.constant 0 : index
    %7 = vector.load %arg7[%c0_12, %c0_13] : memref<1x32xf32, #tpu.memory_space<vmem>>, vector<1x32xf32>
    %c0_14 = arith.constant 0 : index
    %c0_15 = arith.constant 0 : index
    %8 = vector.load %arg8[%c0_14, %c0_15] : memref<1x32xf32, #tpu.memory_space<vmem>>, vector<1x32xf32>
    %c0_16 = arith.constant 0 : index
    %c0_17 = arith.constant 0 : index
    %9 = vector.load %arg9[%c0_16, %c0_17] : memref<1x32xf32, #tpu.memory_space<vmem>>, vector<1x32xf32>
    %c0_18 = arith.constant 0 : index
    %c0_19 = arith.constant 0 : index
    %10 = vector.load %arg10[%c0_18, %c0_19] : memref<32x64xbf16, #tpu.memory_space<vmem>>, vector<32x64xbf16>
    %c0_20 = arith.constant 0 : index
    %c0_21 = arith.constant 0 : index
    %11 = vector.load %arg11[%c0_20, %c0_21] : memref<1x64xf32, #tpu.memory_space<vmem>>, vector<1x64xf32>
    %c0_22 = arith.constant 0 : index
    %c0_23 = arith.constant 0 : index
    %12 = vector.load %arg12[%c0_22, %c0_23] : memref<64x32xbf16, #tpu.memory_space<vmem>>, vector<64x32xbf16>
    %c0_24 = arith.constant 0 : index
    %c0_25 = arith.constant 0 : index
    %13 = vector.load %arg13[%c0_24, %c0_25] : memref<1x32xf32, #tpu.memory_space<vmem>>, vector<1x32xf32>
    %cst = arith.constant dense<0.000000e+00> : vector<8xf32>
    %14 = vector.multi_reduction <add>, %1, %cst [1] : vector<8x32xf32> to vector<8xf32>
    %15 = vector.shape_cast %14 : vector<8xf32> to vector<8x1xf32>
    %cst_26 = arith.constant 3.200000e+01 : f32
    %16 = vector.broadcast %cst_26 : f32 to vector<8x1xf32>
    %17 = arith.divf %15, %16 : vector<8x1xf32>
    %18 = vector.broadcast %17 : vector<8x1xf32> to vector<8x32xf32>
    %19 = arith.subf %1, %18 : vector<8x32xf32>
    %20 = arith.mulf %19, %19 : vector<8x32xf32>
    %cst_27 = arith.constant dense<0.000000e+00> : vector<8xf32>
    %21 = vector.multi_reduction <add>, %20, %cst_27 [1] : vector<8x32xf32> to vector<8xf32>
    %22 = vector.shape_cast %21 : vector<8xf32> to vector<8x1xf32>
    %cst_28 = arith.constant 3.200000e+01 : f32
    %23 = vector.broadcast %cst_28 : f32 to vector<8x1xf32>
    %24 = arith.divf %22, %23 : vector<8x1xf32>
    %cst_29 = arith.constant 9.99999974E-6 : f32
    %25 = vector.broadcast %cst_29 : f32 to vector<8x1xf32>
    %26 = arith.addf %24, %25 : vector<8x1xf32>
    %27 = math.rsqrt %26 : vector<8x1xf32>
    %28 = vector.broadcast %27 : vector<8x1xf32> to vector<8x32xf32>
    %29 = arith.mulf %19, %28 : vector<8x32xf32>
    %30 = vector.broadcast %2 : vector<1x32xf32> to vector<8x32xf32>
    %31 = arith.mulf %29, %30 : vector<8x32xf32>
    %32 = vector.broadcast %3 : vector<1x32xf32> to vector<8x32xf32>
    %33 = arith.addf %31, %32 : vector<8x32xf32>
    %34 = arith.truncf %33 : vector<8x32xf32> to vector<8x32xbf16>
    %cst_30 = arith.constant dense<0.000000e+00> : vector<8x96xf32>
    %35 = tpu.matmul %34, %4, %cst_30 {dimension_numbers = #tpu.dot_dimension_numbers<[1], [0], [0], [1], [0, 0, 1, 1], [], []>} : vector<8x32xbf16>, vector<32x96xbf16>, vector<8x96xf32> -> vector<8x96xf32>
    %36 = vector.broadcast %5 : vector<1x96xf32> to vector<8x96xf32>
    %37 = arith.addf %35, %36 : vector<8x96xf32>
    %38 = arith.truncf %37 : vector<8x96xf32> to vector<8x96xbf16>
    %cst_31 = arith.constant 0.000000e+00 : f32
    %39 = vector.broadcast %cst_31 : f32 to vector<8x32xf32>
    %40 = vector.extract_strided_slice %38 {offsets = [0, 0], sizes = [8, 8], strides = [1, 1]} : vector<8x96xbf16> to vector<8x8xbf16>
    %41 = vector.extract_strided_slice %38 {offsets = [0, 32], sizes = [8, 8], strides = [1, 1]} : vector<8x96xbf16> to vector<8x8xbf16>
    %42 = vector.extract_strided_slice %38 {offsets = [0, 64], sizes = [8, 8], strides = [1, 1]} : vector<8x96xbf16> to vector<8x8xbf16>
    %cst_32 = arith.constant dense<0.000000e+00> : vector<8x8xf32>
    %43 = tpu.matmul %40, %41, %cst_32 {dimension_numbers = #tpu.dot_dimension_numbers<[1], [1], [0], [0], [0, 0, 1, 0], [], []>} : vector<8x8xbf16>, vector<8x8xbf16>, vector<8x8xf32> -> vector<8x8xf32>
    %cst_33 = arith.constant 0.353553385 : f32
    %44 = vector.broadcast %cst_33 : f32 to vector<8x8xf32>
    %45 = arith.mulf %43, %44 : vector<8x8xf32>
    %cst_34 = arith.constant dense<0xFF800000> : vector<8xf32>
    %46 = vector.multi_reduction <maximumf>, %45, %cst_34 [1] : vector<8x8xf32> to vector<8xf32>
    %47 = vector.shape_cast %46 : vector<8xf32> to vector<8x1xf32>
    %48 = vector.broadcast %47 : vector<8x1xf32> to vector<8x8xf32>
    %49 = arith.subf %45, %48 : vector<8x8xf32>
    %50 = math.exp %49 : vector<8x8xf32>
    %cst_35 = arith.constant dense<0.000000e+00> : vector<8xf32>
    %51 = vector.multi_reduction <add>, %50, %cst_35 [1] : vector<8x8xf32> to vector<8xf32>
    %52 = vector.shape_cast %51 : vector<8xf32> to vector<8x1xf32>
    %53 = tpu.reciprocal %52 {approx = true} : vector<8x1xf32> -> vector<8x1xf32>
    %54 = vector.broadcast %53 : vector<8x1xf32> to vector<8x8xf32>
    %55 = arith.mulf %50, %54 : vector<8x8xf32>
    %56 = arith.truncf %55 : vector<8x8xf32> to vector<8x8xbf16>
    %cst_36 = arith.constant dense<0.000000e+00> : vector<8x8xf32>
    %57 = tpu.matmul %56, %42, %cst_36 {dimension_numbers = #tpu.dot_dimension_numbers<[1], [0], [0], [1], [0, 0, 1, 1], [], []>} : vector<8x8xbf16>, vector<8x8xbf16>, vector<8x8xf32> -> vector<8x8xf32>
    %58 = arith.truncf %57 : vector<8x8xf32> to vector<8x8xbf16>
    %59 = vector.extract_strided_slice %6 {offsets = [0, 0], sizes = [8, 32], strides = [1, 1]} : vector<32x32xbf16> to vector<8x32xbf16>
    %cst_37 = arith.constant dense<0.000000e+00> : vector<8x32xf32>
    %60 = tpu.matmul %58, %59, %cst_37 {dimension_numbers = #tpu.dot_dimension_numbers<[1], [0], [0], [1], [0, 0, 1, 1], [], []>} : vector<8x8xbf16>, vector<8x32xbf16>, vector<8x32xf32> -> vector<8x32xf32>
    %61 = arith.addf %39, %60 : vector<8x32xf32>
    %62 = vector.extract_strided_slice %38 {offsets = [0, 8], sizes = [8, 8], strides = [1, 1]} : vector<8x96xbf16> to vector<8x8xbf16>
    %63 = vector.extract_strided_slice %38 {offsets = [0, 40], sizes = [8, 8], strides = [1, 1]} : vector<8x96xbf16> to vector<8x8xbf16>
    %64 = vector.extract_strided_slice %38 {offsets = [0, 72], sizes = [8, 8], strides = [1, 1]} : vector<8x96xbf16> to vector<8x8xbf16>
    %cst_38 = arith.constant dense<0.000000e+00> : vector<8x8xf32>
    %65 = tpu.matmul %62, %63, %cst_38 {dimension_numbers = #tpu.dot_dimension_numbers<[1], [1], [0], [0], [0, 0, 1, 0], [], []>} : vector<8x8xbf16>, vector<8x8xbf16>, vector<8x8xf32> -> vector<8x8xf32>
    %cst_39 = arith.constant 0.353553385 : f32
    %66 = vector.broadcast %cst_39 : f32 to vector<8x8xf32>
    %67 = arith.mulf %65, %66 : vector<8x8xf32>
    %cst_40 = arith.constant dense<0xFF800000> : vector<8xf32>
    %68 = vector.multi_reduction <maximumf>, %67, %cst_40 [1] : vector<8x8xf32> to vector<8xf32>
    %69 = vector.shape_cast %68 : vector<8xf32> to vector<8x1xf32>
    %70 = vector.broadcast %69 : vector<8x1xf32> to vector<8x8xf32>
    %71 = arith.subf %67, %70 : vector<8x8xf32>
    %72 = math.exp %71 : vector<8x8xf32>
    %cst_41 = arith.constant dense<0.000000e+00> : vector<8xf32>
    %73 = vector.multi_reduction <add>, %72, %cst_41 [1] : vector<8x8xf32> to vector<8xf32>
    %74 = vector.shape_cast %73 : vector<8xf32> to vector<8x1xf32>
    %75 = tpu.reciprocal %74 {approx = true} : vector<8x1xf32> -> vector<8x1xf32>
    %76 = vector.broadcast %75 : vector<8x1xf32> to vector<8x8xf32>
    %77 = arith.mulf %72, %76 : vector<8x8xf32>
    %78 = arith.truncf %77 : vector<8x8xf32> to vector<8x8xbf16>
    %cst_42 = arith.constant dense<0.000000e+00> : vector<8x8xf32>
    %79 = tpu.matmul %78, %64, %cst_42 {dimension_numbers = #tpu.dot_dimension_numbers<[1], [0], [0], [1], [0, 0, 1, 1], [], []>} : vector<8x8xbf16>, vector<8x8xbf16>, vector<8x8xf32> -> vector<8x8xf32>
    %80 = arith.truncf %79 : vector<8x8xf32> to vector<8x8xbf16>
    %81 = vector.extract_strided_slice %6 {offsets = [8, 0], sizes = [8, 32], strides = [1, 1]} : vector<32x32xbf16> to vector<8x32xbf16>
    %cst_43 = arith.constant dense<0.000000e+00> : vector<8x32xf32>
    %82 = tpu.matmul %80, %81, %cst_43 {dimension_numbers = #tpu.dot_dimension_numbers<[1], [0], [0], [1], [0, 0, 1, 1], [], []>} : vector<8x8xbf16>, vector<8x32xbf16>, vector<8x32xf32> -> vector<8x32xf32>
    %83 = arith.addf %61, %82 : vector<8x32xf32>
    %84 = vector.extract_strided_slice %38 {offsets = [0, 16], sizes = [8, 8], strides = [1, 1]} : vector<8x96xbf16> to vector<8x8xbf16>
    %85 = vector.extract_strided_slice %38 {offsets = [0, 48], sizes = [8, 8], strides = [1, 1]} : vector<8x96xbf16> to vector<8x8xbf16>
    %86 = vector.extract_strided_slice %38 {offsets = [0, 80], sizes = [8, 8], strides = [1, 1]} : vector<8x96xbf16> to vector<8x8xbf16>
    %cst_44 = arith.constant dense<0.000000e+00> : vector<8x8xf32>
    %87 = tpu.matmul %84, %85, %cst_44 {dimension_numbers = #tpu.dot_dimension_numbers<[1], [1], [0], [0], [0, 0, 1, 0], [], []>} : vector<8x8xbf16>, vector<8x8xbf16>, vector<8x8xf32> -> vector<8x8xf32>
    %cst_45 = arith.constant 0.353553385 : f32
    %88 = vector.broadcast %cst_45 : f32 to vector<8x8xf32>
    %89 = arith.mulf %87, %88 : vector<8x8xf32>
    %cst_46 = arith.constant dense<0xFF800000> : vector<8xf32>
    %90 = vector.multi_reduction <maximumf>, %89, %cst_46 [1] : vector<8x8xf32> to vector<8xf32>
    %91 = vector.shape_cast %90 : vector<8xf32> to vector<8x1xf32>
    %92 = vector.broadcast %91 : vector<8x1xf32> to vector<8x8xf32>
    %93 = arith.subf %89, %92 : vector<8x8xf32>
    %94 = math.exp %93 : vector<8x8xf32>
    %cst_47 = arith.constant dense<0.000000e+00> : vector<8xf32>
    %95 = vector.multi_reduction <add>, %94, %cst_47 [1] : vector<8x8xf32> to vector<8xf32>
    %96 = vector.shape_cast %95 : vector<8xf32> to vector<8x1xf32>
    %97 = tpu.reciprocal %96 {approx = true} : vector<8x1xf32> -> vector<8x1xf32>
    %98 = vector.broadcast %97 : vector<8x1xf32> to vector<8x8xf32>
    %99 = arith.mulf %94, %98 : vector<8x8xf32>
    %100 = arith.truncf %99 : vector<8x8xf32> to vector<8x8xbf16>
    %cst_48 = arith.constant dense<0.000000e+00> : vector<8x8xf32>
    %101 = tpu.matmul %100, %86, %cst_48 {dimension_numbers = #tpu.dot_dimension_numbers<[1], [0], [0], [1], [0, 0, 1, 1], [], []>} : vector<8x8xbf16>, vector<8x8xbf16>, vector<8x8xf32> -> vector<8x8xf32>
    %102 = arith.truncf %101 : vector<8x8xf32> to vector<8x8xbf16>
    %103 = vector.extract_strided_slice %6 {offsets = [16, 0], sizes = [8, 32], strides = [1, 1]} : vector<32x32xbf16> to vector<8x32xbf16>
    %cst_49 = arith.constant dense<0.000000e+00> : vector<8x32xf32>
    %104 = tpu.matmul %102, %103, %cst_49 {dimension_numbers = #tpu.dot_dimension_numbers<[1], [0], [0], [1], [0, 0, 1, 1], [], []>} : vector<8x8xbf16>, vector<8x32xbf16>, vector<8x32xf32> -> vector<8x32xf32>
    %105 = arith.addf %83, %104 : vector<8x32xf32>
    %106 = vector.extract_strided_slice %38 {offsets = [0, 24], sizes = [8, 8], strides = [1, 1]} : vector<8x96xbf16> to vector<8x8xbf16>
    %107 = vector.extract_strided_slice %38 {offsets = [0, 56], sizes = [8, 8], strides = [1, 1]} : vector<8x96xbf16> to vector<8x8xbf16>
    %108 = vector.extract_strided_slice %38 {offsets = [0, 88], sizes = [8, 8], strides = [1, 1]} : vector<8x96xbf16> to vector<8x8xbf16>
    %cst_50 = arith.constant dense<0.000000e+00> : vector<8x8xf32>
    %109 = tpu.matmul %106, %107, %cst_50 {dimension_numbers = #tpu.dot_dimension_numbers<[1], [1], [0], [0], [0, 0, 1, 0], [], []>} : vector<8x8xbf16>, vector<8x8xbf16>, vector<8x8xf32> -> vector<8x8xf32>
    %cst_51 = arith.constant 0.353553385 : f32
    %110 = vector.broadcast %cst_51 : f32 to vector<8x8xf32>
    %111 = arith.mulf %109, %110 : vector<8x8xf32>
    %cst_52 = arith.constant dense<0xFF800000> : vector<8xf32>
    %112 = vector.multi_reduction <maximumf>, %111, %cst_52 [1] : vector<8x8xf32> to vector<8xf32>
    %113 = vector.shape_cast %112 : vector<8xf32> to vector<8x1xf32>
    %114 = vector.broadcast %113 : vector<8x1xf32> to vector<8x8xf32>
    %115 = arith.subf %111, %114 : vector<8x8xf32>
    %116 = math.exp %115 : vector<8x8xf32>
    %cst_53 = arith.constant dense<0.000000e+00> : vector<8xf32>
    %117 = vector.multi_reduction <add>, %116, %cst_53 [1] : vector<8x8xf32> to vector<8xf32>
    %118 = vector.shape_cast %117 : vector<8xf32> to vector<8x1xf32>
    %119 = tpu.reciprocal %118 {approx = true} : vector<8x1xf32> -> vector<8x1xf32>
    %120 = vector.broadcast %119 : vector<8x1xf32> to vector<8x8xf32>
    %121 = arith.mulf %116, %120 : vector<8x8xf32>
    %122 = arith.truncf %121 : vector<8x8xf32> to vector<8x8xbf16>
    %cst_54 = arith.constant dense<0.000000e+00> : vector<8x8xf32>
    %123 = tpu.matmul %122, %108, %cst_54 {dimension_numbers = #tpu.dot_dimension_numbers<[1], [0], [0], [1], [0, 0, 1, 1], [], []>} : vector<8x8xbf16>, vector<8x8xbf16>, vector<8x8xf32> -> vector<8x8xf32>
    %124 = arith.truncf %123 : vector<8x8xf32> to vector<8x8xbf16>
    %125 = vector.extract_strided_slice %6 {offsets = [24, 0], sizes = [8, 32], strides = [1, 1]} : vector<32x32xbf16> to vector<8x32xbf16>
    %cst_55 = arith.constant dense<0.000000e+00> : vector<8x32xf32>
    %126 = tpu.matmul %124, %125, %cst_55 {dimension_numbers = #tpu.dot_dimension_numbers<[1], [0], [0], [1], [0, 0, 1, 1], [], []>} : vector<8x8xbf16>, vector<8x32xbf16>, vector<8x32xf32> -> vector<8x32xf32>
    %127 = arith.addf %105, %126 : vector<8x32xf32>
    %128 = arith.addf %1, %127 : vector<8x32xf32>
    %129 = vector.broadcast %7 : vector<1x32xf32> to vector<8x32xf32>
    %130 = arith.addf %128, %129 : vector<8x32xf32>
    %cst_56 = arith.constant dense<0.000000e+00> : vector<8xf32>
    %131 = vector.multi_reduction <add>, %130, %cst_56 [1] : vector<8x32xf32> to vector<8xf32>
    %132 = vector.shape_cast %131 : vector<8xf32> to vector<8x1xf32>
    %cst_57 = arith.constant 3.200000e+01 : f32
    %133 = vector.broadcast %cst_57 : f32 to vector<8x1xf32>
    %134 = arith.divf %132, %133 : vector<8x1xf32>
    %135 = vector.broadcast %134 : vector<8x1xf32> to vector<8x32xf32>
    %136 = arith.subf %130, %135 : vector<8x32xf32>
    %137 = arith.mulf %136, %136 : vector<8x32xf32>
    %cst_58 = arith.constant dense<0.000000e+00> : vector<8xf32>
    %138 = vector.multi_reduction <add>, %137, %cst_58 [1] : vector<8x32xf32> to vector<8xf32>
    %139 = vector.shape_cast %138 : vector<8xf32> to vector<8x1xf32>
    %cst_59 = arith.constant 3.200000e+01 : f32
    %140 = vector.broadcast %cst_59 : f32 to vector<8x1xf32>
    %141 = arith.divf %139, %140 : vector<8x1xf32>
    %cst_60 = arith.constant 9.99999974E-6 : f32
    %142 = vector.broadcast %cst_60 : f32 to vector<8x1xf32>
    %143 = arith.addf %141, %142 : vector<8x1xf32>
    %144 = math.rsqrt %143 : vector<8x1xf32>
    %145 = vector.broadcast %144 : vector<8x1xf32> to vector<8x32xf32>
    %146 = arith.mulf %136, %145 : vector<8x32xf32>
    %147 = vector.broadcast %8 : vector<1x32xf32> to vector<8x32xf32>
    %148 = arith.mulf %146, %147 : vector<8x32xf32>
    %149 = vector.broadcast %9 : vector<1x32xf32> to vector<8x32xf32>
    %150 = arith.addf %148, %149 : vector<8x32xf32>
    %151 = arith.truncf %150 : vector<8x32xf32> to vector<8x32xbf16>
    %cst_61 = arith.constant dense<0.000000e+00> : vector<8x64xf32>
    %152 = tpu.matmul %151, %10, %cst_61 {dimension_numbers = #tpu.dot_dimension_numbers<[1], [0], [0], [1], [0, 0, 1, 1], [], []>} : vector<8x32xbf16>, vector<32x64xbf16>, vector<8x64xf32> -> vector<8x64xf32>
    %153 = vector.broadcast %11 : vector<1x64xf32> to vector<8x64xf32>
    %154 = arith.addf %152, %153 : vector<8x64xf32>
    %cst_62 = arith.constant 5.000000e-01 : f32
    %155 = vector.broadcast %cst_62 : f32 to vector<8x64xf32>
    %156 = arith.mulf %155, %154 : vector<8x64xf32>
    %cst_63 = arith.constant 4.471500e-02 : f32
    %157 = vector.broadcast %cst_63 : f32 to vector<8x64xf32>
    %158 = arith.mulf %157, %154 : vector<8x64xf32>
    %159 = arith.mulf %158, %154 : vector<8x64xf32>
    %160 = arith.mulf %159, %154 : vector<8x64xf32>
    %161 = arith.addf %154, %160 : vector<8x64xf32>
    %cst_64 = arith.constant 0.797884583 : f32
    %162 = vector.broadcast %cst_64 : f32 to vector<8x64xf32>
    %163 = arith.mulf %162, %161 : vector<8x64xf32>
    %164 = math.tanh %163 : vector<8x64xf32>
    %cst_65 = arith.constant 1.000000e+00 : f32
    %165 = vector.broadcast %cst_65 : f32 to vector<8x64xf32>
    %166 = arith.addf %165, %164 : vector<8x64xf32>
    %167 = arith.mulf %156, %166 : vector<8x64xf32>
    %168 = arith.truncf %167 : vector<8x64xf32> to vector<8x64xbf16>
    %cst_66 = arith.constant dense<0.000000e+00> : vector<8x32xf32>
    %169 = tpu.matmul %168, %12, %cst_66 {dimension_numbers = #tpu.dot_dimension_numbers<[1], [0], [0], [1], [0, 0, 1, 1], [], []>} : vector<8x64xbf16>, vector<64x32xbf16>, vector<8x32xf32> -> vector<8x32xf32>
    %170 = vector.broadcast %13 : vector<1x32xf32> to vector<8x32xf32>
    %171 = arith.addf %169, %170 : vector<8x32xf32>
    %172 = arith.addf %130, %171 : vector<8x32xf32>
    %c0_67 = arith.constant 0 : index
    %c0_68 = arith.constant 0 : index
    %173 = vector.load %arg14[%c0_67, %c0_68] : memref<1x32xf32, #tpu.memory_space<vmem>>, vector<1x32xf32>
    %c0_69 = arith.constant 0 : index
    %c0_70 = arith.constant 0 : index
    %174 = vector.load %arg15[%c0_69, %c0_70] : memref<1x32xf32, #tpu.memory_space<vmem>>, vector<1x32xf32>
    %c0_71 = arith.constant 0 : index
    %c0_72 = arith.constant 0 : index
    %175 = vector.load %arg16[%c0_71, %c0_72] : memref<32x96xbf16, #tpu.memory_space<vmem>>, vector<32x96xbf16>
    %c0_73 = arith.constant 0 : index
    %c0_74 = arith.constant 0 : index
    %176 = vector.load %arg17[%c0_73, %c0_74] : memref<1x96xf32, #tpu.memory_space<vmem>>, vector<1x96xf32>
    %c0_75 = arith.constant 0 : index
    %c0_76 = arith.constant 0 : index
    %177 = vector.load %arg18[%c0_75, %c0_76] : memref<32x32xbf16, #tpu.memory_space<vmem>>, vector<32x32xbf16>
    %c0_77 = arith.constant 0 : index
    %c0_78 = arith.constant 0 : index
    %178 = vector.load %arg19[%c0_77, %c0_78] : memref<1x32xf32, #tpu.memory_space<vmem>>, vector<1x32xf32>
    %c0_79 = arith.constant 0 : index
    %c0_80 = arith.constant 0 : index
    %179 = vector.load %arg20[%c0_79, %c0_80] : memref<1x32xf32, #tpu.memory_space<vmem>>, vector<1x32xf32>
    %c0_81 = arith.constant 0 : index
    %c0_82 = arith.constant 0 : index
    %180 = vector.load %arg21[%c0_81, %c0_82] : memref<1x32xf32, #tpu.memory_space<vmem>>, vector<1x32xf32>
    %c0_83 = arith.constant 0 : index
    %c0_84 = arith.constant 0 : index
    %181 = vector.load %arg22[%c0_83, %c0_84] : memref<32x64xbf16, #tpu.memory_space<vmem>>, vector<32x64xbf16>
    %c0_85 = arith.constant 0 : index
    %c0_86 = arith.constant 0 : index
    %182 = vector.load %arg23[%c0_85, %c0_86] : memref<1x64xf32, #tpu.memory_space<vmem>>, vector<1x64xf32>
    %c0_87 = arith.constant 0 : index
    %c0_88 = arith.constant 0 : index
    %183 = vector.load %arg24[%c0_87, %c0_88] : memref<64x32xbf16, #tpu.memory_space<vmem>>, vector<64x32xbf16>
    %c0_89 = arith.constant 0 : index
    %c0_90 = arith.constant 0 : index
    %184 = vector.load %arg25[%c0_89, %c0_90] : memref<1x32xf32, #tpu.memory_space<vmem>>, vector<1x32xf32>
    %cst_91 = arith.constant dense<0.000000e+00> : vector<8xf32>
    %185 = vector.multi_reduction <add>, %172, %cst_91 [1] : vector<8x32xf32> to vector<8xf32>
    %186 = vector.shape_cast %185 : vector<8xf32> to vector<8x1xf32>
    %cst_92 = arith.constant 3.200000e+01 : f32
    %187 = vector.broadcast %cst_92 : f32 to vector<8x1xf32>
    %188 = arith.divf %186, %187 : vector<8x1xf32>
    %189 = vector.broadcast %188 : vector<8x1xf32> to vector<8x32xf32>
    %190 = arith.subf %172, %189 : vector<8x32xf32>
    %191 = arith.mulf %190, %190 : vector<8x32xf32>
    %cst_93 = arith.constant dense<0.000000e+00> : vector<8xf32>
    %192 = vector.multi_reduction <add>, %191, %cst_93 [1] : vector<8x32xf32> to vector<8xf32>
    %193 = vector.shape_cast %192 : vector<8xf32> to vector<8x1xf32>
    %cst_94 = arith.constant 3.200000e+01 : f32
    %194 = vector.broadcast %cst_94 : f32 to vector<8x1xf32>
    %195 = arith.divf %193, %194 : vector<8x1xf32>
    %cst_95 = arith.constant 9.99999974E-6 : f32
    %196 = vector.broadcast %cst_95 : f32 to vector<8x1xf32>
    %197 = arith.addf %195, %196 : vector<8x1xf32>
    %198 = math.rsqrt %197 : vector<8x1xf32>
    %199 = vector.broadcast %198 : vector<8x1xf32> to vector<8x32xf32>
    %200 = arith.mulf %190, %199 : vector<8x32xf32>
    %201 = vector.broadcast %173 : vector<1x32xf32> to vector<8x32xf32>
    %202 = arith.mulf %200, %201 : vector<8x32xf32>
    %203 = vector.broadcast %174 : vector<1x32xf32> to vector<8x32xf32>
    %204 = arith.addf %202, %203 : vector<8x32xf32>
    %205 = arith.truncf %204 : vector<8x32xf32> to vector<8x32xbf16>
    %cst_96 = arith.constant dense<0.000000e+00> : vector<8x96xf32>
    %206 = tpu.matmul %205, %175, %cst_96 {dimension_numbers = #tpu.dot_dimension_numbers<[1], [0], [0], [1], [0, 0, 1, 1], [], []>} : vector<8x32xbf16>, vector<32x96xbf16>, vector<8x96xf32> -> vector<8x96xf32>
    %207 = vector.broadcast %176 : vector<1x96xf32> to vector<8x96xf32>
    %208 = arith.addf %206, %207 : vector<8x96xf32>
    %209 = arith.truncf %208 : vector<8x96xf32> to vector<8x96xbf16>
    %cst_97 = arith.constant 0.000000e+00 : f32
    %210 = vector.broadcast %cst_97 : f32 to vector<8x32xf32>
    %211 = vector.extract_strided_slice %209 {offsets = [0, 0], sizes = [8, 8], strides = [1, 1]} : vector<8x96xbf16> to vector<8x8xbf16>
    %212 = vector.extract_strided_slice %209 {offsets = [0, 32], sizes = [8, 8], strides = [1, 1]} : vector<8x96xbf16> to vector<8x8xbf16>
    %213 = vector.extract_strided_slice %209 {offsets = [0, 64], sizes = [8, 8], strides = [1, 1]} : vector<8x96xbf16> to vector<8x8xbf16>
    %cst_98 = arith.constant dense<0.000000e+00> : vector<8x8xf32>
    %214 = tpu.matmul %211, %212, %cst_98 {dimension_numbers = #tpu.dot_dimension_numbers<[1], [1], [0], [0], [0, 0, 1, 0], [], []>} : vector<8x8xbf16>, vector<8x8xbf16>, vector<8x8xf32> -> vector<8x8xf32>
    %cst_99 = arith.constant 0.353553385 : f32
    %215 = vector.broadcast %cst_99 : f32 to vector<8x8xf32>
    %216 = arith.mulf %214, %215 : vector<8x8xf32>
    %cst_100 = arith.constant dense<0xFF800000> : vector<8xf32>
    %217 = vector.multi_reduction <maximumf>, %216, %cst_100 [1] : vector<8x8xf32> to vector<8xf32>
    %218 = vector.shape_cast %217 : vector<8xf32> to vector<8x1xf32>
    %219 = vector.broadcast %218 : vector<8x1xf32> to vector<8x8xf32>
    %220 = arith.subf %216, %219 : vector<8x8xf32>
    %221 = math.exp %220 : vector<8x8xf32>
    %cst_101 = arith.constant dense<0.000000e+00> : vector<8xf32>
    %222 = vector.multi_reduction <add>, %221, %cst_101 [1] : vector<8x8xf32> to vector<8xf32>
    %223 = vector.shape_cast %222 : vector<8xf32> to vector<8x1xf32>
    %224 = tpu.reciprocal %223 {approx = true} : vector<8x1xf32> -> vector<8x1xf32>
    %225 = vector.broadcast %224 : vector<8x1xf32> to vector<8x8xf32>
    %226 = arith.mulf %221, %225 : vector<8x8xf32>
    %227 = arith.truncf %226 : vector<8x8xf32> to vector<8x8xbf16>
    %cst_102 = arith.constant dense<0.000000e+00> : vector<8x8xf32>
    %228 = tpu.matmul %227, %213, %cst_102 {dimension_numbers = #tpu.dot_dimension_numbers<[1], [0], [0], [1], [0, 0, 1, 1], [], []>} : vector<8x8xbf16>, vector<8x8xbf16>, vector<8x8xf32> -> vector<8x8xf32>
    %229 = arith.truncf %228 : vector<8x8xf32> to vector<8x8xbf16>
    %230 = vector.extract_strided_slice %177 {offsets = [0, 0], sizes = [8, 32], strides = [1, 1]} : vector<32x32xbf16> to vector<8x32xbf16>
    %cst_103 = arith.constant dense<0.000000e+00> : vector<8x32xf32>
    %231 = tpu.matmul %229, %230, %cst_103 {dimension_numbers = #tpu.dot_dimension_numbers<[1], [0], [0], [1], [0, 0, 1, 1], [], []>} : vector<8x8xbf16>, vector<8x32xbf16>, vector<8x32xf32> -> vector<8x32xf32>
    %232 = arith.addf %210, %231 : vector<8x32xf32>
    %233 = vector.extract_strided_slice %209 {offsets = [0, 8], sizes = [8, 8], strides = [1, 1]} : vector<8x96xbf16> to vector<8x8xbf16>
    %234 = vector.extract_strided_slice %209 {offsets = [0, 40], sizes = [8, 8], strides = [1, 1]} : vector<8x96xbf16> to vector<8x8xbf16>
    %235 = vector.extract_strided_slice %209 {offsets = [0, 72], sizes = [8, 8], strides = [1, 1]} : vector<8x96xbf16> to vector<8x8xbf16>
    %cst_104 = arith.constant dense<0.000000e+00> : vector<8x8xf32>
    %236 = tpu.matmul %233, %234, %cst_104 {dimension_numbers = #tpu.dot_dimension_numbers<[1], [1], [0], [0], [0, 0, 1, 0], [], []>} : vector<8x8xbf16>, vector<8x8xbf16>, vector<8x8xf32> -> vector<8x8xf32>
    %cst_105 = arith.constant 0.353553385 : f32
    %237 = vector.broadcast %cst_105 : f32 to vector<8x8xf32>
    %238 = arith.mulf %236, %237 : vector<8x8xf32>
    %cst_106 = arith.constant dense<0xFF800000> : vector<8xf32>
    %239 = vector.multi_reduction <maximumf>, %238, %cst_106 [1] : vector<8x8xf32> to vector<8xf32>
    %240 = vector.shape_cast %239 : vector<8xf32> to vector<8x1xf32>
    %241 = vector.broadcast %240 : vector<8x1xf32> to vector<8x8xf32>
    %242 = arith.subf %238, %241 : vector<8x8xf32>
    %243 = math.exp %242 : vector<8x8xf32>
    %cst_107 = arith.constant dense<0.000000e+00> : vector<8xf32>
    %244 = vector.multi_reduction <add>, %243, %cst_107 [1] : vector<8x8xf32> to vector<8xf32>
    %245 = vector.shape_cast %244 : vector<8xf32> to vector<8x1xf32>
    %246 = tpu.reciprocal %245 {approx = true} : vector<8x1xf32> -> vector<8x1xf32>
    %247 = vector.broadcast %246 : vector<8x1xf32> to vector<8x8xf32>
    %248 = arith.mulf %243, %247 : vector<8x8xf32>
    %249 = arith.truncf %248 : vector<8x8xf32> to vector<8x8xbf16>
    %cst_108 = arith.constant dense<0.000000e+00> : vector<8x8xf32>
    %250 = tpu.matmul %249, %235, %cst_108 {dimension_numbers = #tpu.dot_dimension_numbers<[1], [0], [0], [1], [0, 0, 1, 1], [], []>} : vector<8x8xbf16>, vector<8x8xbf16>, vector<8x8xf32> -> vector<8x8xf32>
    %251 = arith.truncf %250 : vector<8x8xf32> to vector<8x8xbf16>
    %252 = vector.extract_strided_slice %177 {offsets = [8, 0], sizes = [8, 32], strides = [1, 1]} : vector<32x32xbf16> to vector<8x32xbf16>
    %cst_109 = arith.constant dense<0.000000e+00> : vector<8x32xf32>
    %253 = tpu.matmul %251, %252, %cst_109 {dimension_numbers = #tpu.dot_dimension_numbers<[1], [0], [0], [1], [0, 0, 1, 1], [], []>} : vector<8x8xbf16>, vector<8x32xbf16>, vector<8x32xf32> -> vector<8x32xf32>
    %254 = arith.addf %232, %253 : vector<8x32xf32>
    %255 = vector.extract_strided_slice %209 {offsets = [0, 16], sizes = [8, 8], strides = [1, 1]} : vector<8x96xbf16> to vector<8x8xbf16>
    %256 = vector.extract_strided_slice %209 {offsets = [0, 48], sizes = [8, 8], strides = [1, 1]} : vector<8x96xbf16> to vector<8x8xbf16>
    %257 = vector.extract_strided_slice %209 {offsets = [0, 80], sizes = [8, 8], strides = [1, 1]} : vector<8x96xbf16> to vector<8x8xbf16>
    %cst_110 = arith.constant dense<0.000000e+00> : vector<8x8xf32>
    %258 = tpu.matmul %255, %256, %cst_110 {dimension_numbers = #tpu.dot_dimension_numbers<[1], [1], [0], [0], [0, 0, 1, 0], [], []>} : vector<8x8xbf16>, vector<8x8xbf16>, vector<8x8xf32> -> vector<8x8xf32>
    %cst_111 = arith.constant 0.353553385 : f32
    %259 = vector.broadcast %cst_111 : f32 to vector<8x8xf32>
    %260 = arith.mulf %258, %259 : vector<8x8xf32>
    %cst_112 = arith.constant dense<0xFF800000> : vector<8xf32>
    %261 = vector.multi_reduction <maximumf>, %260, %cst_112 [1] : vector<8x8xf32> to vector<8xf32>
    %262 = vector.shape_cast %261 : vector<8xf32> to vector<8x1xf32>
    %263 = vector.broadcast %262 : vector<8x1xf32> to vector<8x8xf32>
    %264 = arith.subf %260, %263 : vector<8x8xf32>
    %265 = math.exp %264 : vector<8x8xf32>
    %cst_113 = arith.constant dense<0.000000e+00> : vector<8xf32>
    %266 = vector.multi_reduction <add>, %265, %cst_113 [1] : vector<8x8xf32> to vector<8xf32>
    %267 = vector.shape_cast %266 : vector<8xf32> to vector<8x1xf32>
    %268 = tpu.reciprocal %267 {approx = true} : vector<8x1xf32> -> vector<8x1xf32>
    %269 = vector.broadcast %268 : vector<8x1xf32> to vector<8x8xf32>
    %270 = arith.mulf %265, %269 : vector<8x8xf32>
    %271 = arith.truncf %270 : vector<8x8xf32> to vector<8x8xbf16>
    %cst_114 = arith.constant dense<0.000000e+00> : vector<8x8xf32>
    %272 = tpu.matmul %271, %257, %cst_114 {dimension_numbers = #tpu.dot_dimension_numbers<[1], [0], [0], [1], [0, 0, 1, 1], [], []>} : vector<8x8xbf16>, vector<8x8xbf16>, vector<8x8xf32> -> vector<8x8xf32>
    %273 = arith.truncf %272 : vector<8x8xf32> to vector<8x8xbf16>
    %274 = vector.extract_strided_slice %177 {offsets = [16, 0], sizes = [8, 32], strides = [1, 1]} : vector<32x32xbf16> to vector<8x32xbf16>
    %cst_115 = arith.constant dense<0.000000e+00> : vector<8x32xf32>
    %275 = tpu.matmul %273, %274, %cst_115 {dimension_numbers = #tpu.dot_dimension_numbers<[1], [0], [0], [1], [0, 0, 1, 1], [], []>} : vector<8x8xbf16>, vector<8x32xbf16>, vector<8x32xf32> -> vector<8x32xf32>
    %276 = arith.addf %254, %275 : vector<8x32xf32>
    %277 = vector.extract_strided_slice %209 {offsets = [0, 24], sizes = [8, 8], strides = [1, 1]} : vector<8x96xbf16> to vector<8x8xbf16>
    %278 = vector.extract_strided_slice %209 {offsets = [0, 56], sizes = [8, 8], strides = [1, 1]} : vector<8x96xbf16> to vector<8x8xbf16>
    %279 = vector.extract_strided_slice %209 {offsets = [0, 88], sizes = [8, 8], strides = [1, 1]} : vector<8x96xbf16> to vector<8x8xbf16>
    %cst_116 = arith.constant dense<0.000000e+00> : vector<8x8xf32>
    %280 = tpu.matmul %277, %278, %cst_116 {dimension_numbers = #tpu.dot_dimension_numbers<[1], [1], [0], [0], [0, 0, 1, 0], [], []>} : vector<8x8xbf16>, vector<8x8xbf16>, vector<8x8xf32> -> vector<8x8xf32>
    %cst_117 = arith.constant 0.353553385 : f32
    %281 = vector.broadcast %cst_117 : f32 to vector<8x8xf32>
    %282 = arith.mulf %280, %281 : vector<8x8xf32>
    %cst_118 = arith.constant dense<0xFF800000> : vector<8xf32>
    %283 = vector.multi_reduction <maximumf>, %282, %cst_118 [1] : vector<8x8xf32> to vector<8xf32>
    %284 = vector.shape_cast %283 : vector<8xf32> to vector<8x1xf32>
    %285 = vector.broadcast %284 : vector<8x1xf32> to vector<8x8xf32>
    %286 = arith.subf %282, %285 : vector<8x8xf32>
    %287 = math.exp %286 : vector<8x8xf32>
    %cst_119 = arith.constant dense<0.000000e+00> : vector<8xf32>
    %288 = vector.multi_reduction <add>, %287, %cst_119 [1] : vector<8x8xf32> to vector<8xf32>
    %289 = vector.shape_cast %288 : vector<8xf32> to vector<8x1xf32>
    %290 = tpu.reciprocal %289 {approx = true} : vector<8x1xf32> -> vector<8x1xf32>
    %291 = vector.broadcast %290 : vector<8x1xf32> to vector<8x8xf32>
    %292 = arith.mulf %287, %291 : vector<8x8xf32>
    %293 = arith.truncf %292 : vector<8x8xf32> to vector<8x8xbf16>
    %cst_120 = arith.constant dense<0.000000e+00> : vector<8x8xf32>
    %294 = tpu.matmul %293, %279, %cst_120 {dimension_numbers = #tpu.dot_dimension_numbers<[1], [0], [0], [1], [0, 0, 1, 1], [], []>} : vector<8x8xbf16>, vector<8x8xbf16>, vector<8x8xf32> -> vector<8x8xf32>
    %295 = arith.truncf %294 : vector<8x8xf32> to vector<8x8xbf16>
    %296 = vector.extract_strided_slice %177 {offsets = [24, 0], sizes = [8, 32], strides = [1, 1]} : vector<32x32xbf16> to vector<8x32xbf16>
    %cst_121 = arith.constant dense<0.000000e+00> : vector<8x32xf32>
    %297 = tpu.matmul %295, %296, %cst_121 {dimension_numbers = #tpu.dot_dimension_numbers<[1], [0], [0], [1], [0, 0, 1, 1], [], []>} : vector<8x8xbf16>, vector<8x32xbf16>, vector<8x32xf32> -> vector<8x32xf32>
    %298 = arith.addf %276, %297 : vector<8x32xf32>
    %299 = arith.addf %172, %298 : vector<8x32xf32>
    %300 = vector.broadcast %178 : vector<1x32xf32> to vector<8x32xf32>
    %301 = arith.addf %299, %300 : vector<8x32xf32>
    %cst_122 = arith.constant dense<0.000000e+00> : vector<8xf32>
    %302 = vector.multi_reduction <add>, %301, %cst_122 [1] : vector<8x32xf32> to vector<8xf32>
    %303 = vector.shape_cast %302 : vector<8xf32> to vector<8x1xf32>
    %cst_123 = arith.constant 3.200000e+01 : f32
    %304 = vector.broadcast %cst_123 : f32 to vector<8x1xf32>
    %305 = arith.divf %303, %304 : vector<8x1xf32>
    %306 = vector.broadcast %305 : vector<8x1xf32> to vector<8x32xf32>
    %307 = arith.subf %301, %306 : vector<8x32xf32>
    %308 = arith.mulf %307, %307 : vector<8x32xf32>
    %cst_124 = arith.constant dense<0.000000e+00> : vector<8xf32>
    %309 = vector.multi_reduction <add>, %308, %cst_124 [1] : vector<8x32xf32> to vector<8xf32>
    %310 = vector.shape_cast %309 : vector<8xf32> to vector<8x1xf32>
    %cst_125 = arith.constant 3.200000e+01 : f32
    %311 = vector.broadcast %cst_125 : f32 to vector<8x1xf32>
    %312 = arith.divf %310, %311 : vector<8x1xf32>
    %cst_126 = arith.constant 9.99999974E-6 : f32
    %313 = vector.broadcast %cst_126 : f32 to vector<8x1xf32>
    %314 = arith.addf %312, %313 : vector<8x1xf32>
    %315 = math.rsqrt %314 : vector<8x1xf32>
    %316 = vector.broadcast %315 : vector<8x1xf32> to vector<8x32xf32>
    %317 = arith.mulf %307, %316 : vector<8x32xf32>
    %318 = vector.broadcast %179 : vector<1x32xf32> to vector<8x32xf32>
    %319 = arith.mulf %317, %318 : vector<8x32xf32>
    %320 = vector.broadcast %180 : vector<1x32xf32> to vector<8x32xf32>
    %321 = arith.addf %319, %320 : vector<8x32xf32>
    %322 = arith.truncf %321 : vector<8x32xf32> to vector<8x32xbf16>
    %cst_127 = arith.constant dense<0.000000e+00> : vector<8x64xf32>
    %323 = tpu.matmul %322, %181, %cst_127 {dimension_numbers = #tpu.dot_dimension_numbers<[1], [0], [0], [1], [0, 0, 1, 1], [], []>} : vector<8x32xbf16>, vector<32x64xbf16>, vector<8x64xf32> -> vector<8x64xf32>
    %324 = vector.broadcast %182 : vector<1x64xf32> to vector<8x64xf32>
    %325 = arith.addf %323, %324 : vector<8x64xf32>
    %cst_128 = arith.constant 5.000000e-01 : f32
    %326 = vector.broadcast %cst_128 : f32 to vector<8x64xf32>
    %327 = arith.mulf %326, %325 : vector<8x64xf32>
    %cst_129 = arith.constant 4.471500e-02 : f32
    %328 = vector.broadcast %cst_129 : f32 to vector<8x64xf32>
    %329 = arith.mulf %328, %325 : vector<8x64xf32>
    %330 = arith.mulf %329, %325 : vector<8x64xf32>
    %331 = arith.mulf %330, %325 : vector<8x64xf32>
    %332 = arith.addf %325, %331 : vector<8x64xf32>
    %cst_130 = arith.constant 0.797884583 : f32
    %333 = vector.broadcast %cst_130 : f32 to vector<8x64xf32>
    %334 = arith.mulf %333, %332 : vector<8x64xf32>
    %335 = math.tanh %334 : vector<8x64xf32>
    %cst_131 = arith.constant 1.000000e+00 : f32
    %336 = vector.broadcast %cst_131 : f32 to vector<8x64xf32>
    %337 = arith.addf %336, %335 : vector<8x64xf32>
    %338 = arith.mulf %327, %337 : vector<8x64xf32>
    %339 = arith.truncf %338 : vector<8x64xf32> to vector<8x64xbf16>
    %cst_132 = arith.constant dense<0.000000e+00> : vector<8x32xf32>
    %340 = tpu.matmul %339, %183, %cst_132 {dimension_numbers = #tpu.dot_dimension_numbers<[1], [0], [0], [1], [0, 0, 1, 1], [], []>} : vector<8x64xbf16>, vector<64x32xbf16>, vector<8x32xf32> -> vector<8x32xf32>
    %341 = vector.broadcast %184 : vector<1x32xf32> to vector<8x32xf32>
    %342 = arith.addf %340, %341 : vector<8x32xf32>
    %343 = arith.addf %301, %342 : vector<8x32xf32>
    %c0_133 = arith.constant 0 : index
    %c0_134 = arith.constant 0 : index
    %c0_135 = arith.constant 0 : index
    %344 = vector.load %arg26[%c0_133, %c0_134, %c0_135] : memref<1x8x32xf32, #tpu.memory_space<vmem>>, vector<1x8x32xf32>
    %345 = vector.shape_cast %344 : vector<1x8x32xf32> to vector<8x32xf32>
    %346 = vector.shape_cast %343 : vector<8x32xf32> to vector<1x8x32xf32>
    tpu.vector_store %arg26[%c0_133, %c0_134, %c0_135], %346 {strides = array<i32>} : memref<1x8x32xf32, #tpu.memory_space<vmem>>, vector<1x8x32xf32>,
    return
  }
  func.func @transform_0(%arg0: i32) -> (i32, i32, i32) {
    %c0_i32 = arith.constant 0 : i32
    %c0_i32_0 = arith.constant 0 : i32
    %c0_i32_1 = arith.constant 0 : i32
    return %arg0, %c0_i32, %c0_i32_0 : i32, i32, i32
  }
  func.func @transform_1(%arg0: i32) -> (i32, i32) {
    %c0_i32 = arith.constant 0 : i32
    %c0_i32_0 = arith.constant 0 : i32
    %c0_i32_1 = arith.constant 0 : i32
    return %c0_i32, %c0_i32_0 : i32, i32
  }
  func.func @transform_2(%arg0: i32) -> (i32, i32) {
    %c0_i32 = arith.constant 0 : i32
    %c0_i32_0 = arith.constant 0 : i32
    %c0_i32_1 = arith.constant 0 : i32
    return %c0_i32, %c0_i32_0 : i32, i32
  }
  func.func @transform_3(%arg0: i32) -> (i32, i32) {
    %c0_i32 = arith.constant 0 : i32
    %c0_i32_0 = arith.constant 0 : i32
    %c0_i32_1 = arith.constant 0 : i32
    return %c0_i32, %c0_i32_0 : i32, i32
  }
  func.func @transform_4(%arg0: i32) -> (i32, i32) {
    %c0_i32 = arith.constant 0 : i32
    %c0_i32_0 = arith.constant 0 : i32
    %c0_i32_1 = arith.constant 0 : i32
    return %c0_i32, %c0_i32_0 : i32, i32
  }
  func.func @transform_5(%arg0: i32) -> (i32, i32) {
    %c0_i32 = arith.constant 0 : i32
    %c0_i32_0 = arith.constant 0 : i32
    %c0_i32_1 = arith.constant 0 : i32
    return %c0_i32, %c0_i32_0 : i32, i32
  }
  func.func @transform_6(%arg0: i32) -> (i32, i32) {
    %c0_i32 = arith.constant 0 : i32
    %c0_i32_0 = arith.constant 0 : i32
    %c0_i32_1 = arith.constant 0 : i32
    return %c0_i32, %c0_i32_0 : i32, i32
  }
  func.func @transform_7(%arg0: i32) -> (i32, i32) {
    %c0_i32 = arith.constant 0 : i32
    %c0_i32_0 = arith.constant 0 : i32
    %c0_i32_1 = arith.constant 0 : i32
    return %c0_i32, %c0_i32_0 : i32, i32
  }
  func.func @transform_8(%arg0: i32) -> (i32, i32) {
    %c0_i32 = arith.constant 0 : i32
    %c0_i32_0 = arith.constant 0 : i32
    %c0_i32_1 = arith.constant 0 : i32
    return %c0_i32, %c0_i32_0 : i32, i32
  }
  func.func @transform_9(%arg0: i32) -> (i32, i32) {
    %c0_i32 = arith.constant 0 : i32
    %c0_i32_0 = arith.constant 0 : i32
    %c0_i32_1 = arith.constant 0 : i32
    return %c0_i32, %c0_i32_0 : i32, i32
  }
  func.func @transform_10(%arg0: i32) -> (i32, i32) {
    %c0_i32 = arith.constant 0 : i32
    %c0_i32_0 = arith.constant 0 : i32
    %c0_i32_1 = arith.constant 0 : i32
    return %c0_i32, %c0_i32_0 : i32, i32
  }
  func.func @transform_11(%arg0: i32) -> (i32, i32) {
    %c0_i32 = arith.constant 0 : i32
    %c0_i32_0 = arith.constant 0 : i32
    %c0_i32_1 = arith.constant 0 : i32
    return %c0_i32, %c0_i32_0 : i32, i32
  }
  func.func @transform_12(%arg0: i32) -> (i32, i32) {
    %c0_i32 = arith.constant 0 : i32
    %c0_i32_0 = arith.constant 0 : i32
    %c0_i32_1 = arith.constant 0 : i32
    return %c0_i32, %c0_i32_0 : i32, i32
  }
  func.func @transform_13(%arg0: i32) -> (i32, i32) {
    %c0_i32 = arith.constant 0 : i32
    %c0_i32_0 = arith.constant 0 : i32
    %c0_i32_1 = arith.constant 0 : i32
    return %c0_i32, %c0_i32_0 : i32, i32
  }
  func.func @transform_14(%arg0: i32) -> (i32, i32) {
    %c0_i32 = arith.constant 0 : i32
    %c0_i32_0 = arith.constant 0 : i32
    %c0_i32_1 = arith.constant 0 : i32
    return %c0_i32, %c0_i32_0 : i32, i32
  }
  func.func @transform_15(%arg0: i32) -> (i32, i32) {
    %c0_i32 = arith.constant 0 : i32
    %c0_i32_0 = arith.constant 0 : i32
    %c0_i32_1 = arith.constant 0 : i32
    return %c0_i32, %c0_i32_0 : i32, i32
  }
  func.func @transform_16(%arg0: i32) -> (i32, i32) {
    %c0_i32 = arith.constant 0 : i32
    %c0_i32_0 = arith.constant 0 : i32
    %c0_i32_1 = arith.constant 0 : i32
    return %c0_i32, %c0_i32_0 : i32, i32
  }
  func.func @transform_17(%arg0: i32) -> (i32, i32) {
    %c0_i32 = arith.constant 0 : i32
    %c0_i32_0 = arith.constant 0 : i32
    %c0_i32_1 = arith.constant 0 : i32
    return %c0_i32, %c0_i32_0 : i32, i32
  }
  func.func @transform_18(%arg0: i32) -> (i32, i32) {
    %c0_i32 = arith.constant 0 : i32
    %c0_i32_0 = arith.constant 0 : i32
    %c0_i32_1 = arith.constant 0 : i32
    return %c0_i32, %c0_i32_0 : i32, i32
  }
  func.func @transform_19(%arg0: i32) -> (i32, i32) {
    %c0_i32 = arith.constant 0 : i32
    %c0_i32_0 = arith.constant 0 : i32
    %c0_i32_1 = arith.constant 0 : i32
    return %c0_i32, %c0_i32_0 : i32, i32
  }
  func.func @transform_20(%arg0: i32) -> (i32, i32) {
    %c0_i32 = arith.constant 0 : i32
    %c0_i32_0 = arith.constant 0 : i32
    %c0_i32_1 = arith.constant 0 : i32
    return %c0_i32, %c0_i32_0 : i32, i32
  }
  func.func @transform_21(%arg0: i32) -> (i32, i32) {
    %c0_i32 = arith.constant 0 : i32
    %c0_i32_0 = arith.constant 0 : i32
    %c0_i32_1 = arith.constant 0 : i32
    return %c0_i32, %c0_i32_0 : i32, i32
  }
  func.func @transform_22(%arg0: i32) -> (i32, i32) {
    %c0_i32 = arith.constant 0 : i32
    %c0_i32_0 = arith.constant 0 : i32
    %c0_i32_1 = arith.constant 0 : i32
    return %c0_i32, %c0_i32_0 : i32, i32
  }
  func.func @transform_23(%arg0: i32) -> (i32, i32) {
    %c0_i32 = arith.constant 0 : i32
    %c0_i32_0 = arith.constant 0 : i32
    %c0_i32_1 = arith.constant 0 : i32
    return %c0_i32, %c0_i32_0 : i32, i32
  }
  func.func @transform_24(%arg0: i32) -> (i32, i32) {
    %c0_i32 = arith.constant 0 : i32
    %c0_i32_0 = arith.constant 0 : i32
    %c0_i32_1 = arith.constant 0 : i32
    return %c0_i32, %c0_i32_0 : i32, i32
  }
  func.func @transform_25(%arg0: i32) -> (i32, i32, i32) {
    %c0_i32 = arith.constant 0 : i32
    %c0_i32_0 = arith.constant 0 : i32
    %c0_i32_1 = arith.constant 0 : i32
    return %arg0, %c0_i32, %c0_i32_0 : i32, i32, i32
  }
}

</mosaic_0001>

<llo_original>
// kernel: vit_encoder.1
$region0: #{vit_encoder.1}
  #allocation0 [shape = 'u32[]', space=smem, size = 0x4, offset = 0x4, fixed_abs, tag = 'smem constant byte address 0x4 - core index']
  #allocation1 [shape = 'u32[72,128]{1,0:T(1,128)}', space=vmem, size = 0x9000, scoped, tag = 'internal scratch']
  %s0 = inlined_call_operand.vmem [shape: f32[2,8,32], index: 0, kind: input, shape index: {}]
  %s1 = inlined_call_operand.vmem [shape: f32[1,32], index: 1, kind: input, shape index: {}]
  %s2 = inlined_call_operand.vmem [shape: f32[1,32], index: 2, kind: input, shape index: {}]
  %s3 = inlined_call_operand.vmem [shape: bf16[32,96], index: 3, kind: input, shape index: {}]
  %s4 = inlined_call_operand.vmem [shape: f32[1,96], index: 4, kind: input, shape index: {}]
  %s5 = inlined_call_operand.vmem [shape: bf16[32,32], index: 5, kind: input, shape index: {}]
  %s6 = inlined_call_operand.vmem [shape: f32[1,32], index: 6, kind: input, shape index: {}]
  %s7 = inlined_call_operand.vmem [shape: f32[1,32], index: 7, kind: input, shape index: {}]
  %s8 = inlined_call_operand.vmem [shape: f32[1,32], index: 8, kind: input, shape index: {}]
  %s9 = inlined_call_operand.vmem [shape: bf16[32,64], index: 9, kind: input, shape index: {}]
  %s10 = inlined_call_operand.vmem [shape: f32[1,64], index: 10, kind: input, shape index: {}]
  %s11 = inlined_call_operand.vmem [shape: bf16[64,32], index: 11, kind: input, shape index: {}]
  %s12 = inlined_call_operand.vmem [shape: f32[1,32], index: 12, kind: input, shape index: {}]
  %s13 = inlined_call_operand.vmem [shape: f32[1,32], index: 13, kind: input, shape index: {}]
  %s14 = inlined_call_operand.vmem [shape: f32[1,32], index: 14, kind: input, shape index: {}]
  %s15 = inlined_call_operand.vmem [shape: bf16[32,96], index: 15, kind: input, shape index: {}]
  %s16 = inlined_call_operand.vmem [shape: f32[1,96], index: 16, kind: input, shape index: {}]
  %s17 = inlined_call_operand.vmem [shape: bf16[32,32], index: 17, kind: input, shape index: {}]
  %s18 = inlined_call_operand.vmem [shape: f32[1,32], index: 18, kind: input, shape index: {}]
  %s19 = inlined_call_operand.vmem [shape: f32[1,32], index: 19, kind: input, shape index: {}]
  %s20 = inlined_call_operand.vmem [shape: f32[1,32], index: 20, kind: input, shape index: {}]
  %s21 = inlined_call_operand.vmem [shape: bf16[32,64], index: 21, kind: input, shape index: {}]
  %s22 = inlined_call_operand.vmem [shape: f32[1,64], index: 22, kind: input, shape index: {}]
  %s23 = inlined_call_operand.vmem [shape: bf16[64,32], index: 23, kind: input, shape index: {}]
  %s24 = inlined_call_operand.vmem [shape: f32[1,32], index: 24, kind: input, shape index: {}]
  %s25 = inlined_call_operand.hbm [shape: f32[2,8,32], index: 25, kind: output, shape index: {}]
  %s26 = sld [smem:[#allocation0]]
  $region133: #{vit_encoder.1} parent=0
    _
  %s28 = ssub.s32 1, %s26
  %s29 = scalar_select 0, %s28, %s26
  $region1: #{vit_encoder.1} parent=0
    #allocation2 [shape = 'u8[8192]{0}', space=vmem, size = 0x2000, scoped, tag = 'output window, operand 0']
    #allocation3 [shape = 's32[2]{0}', space=sflag, size = 0x8, scoped, tag = 'scoped memory for vit_encoder.1']
    %30 = vsyncpa [#allocation3], 0
    %s31 = scalar_lea.sflag [#allocation3], 1
    %32 = vsyncpa %s31, 0
    loop: start=0, step=1, limit=4
    $region2: #{vit_encoder.1} parent=1 // loop_pre_header
      _
    $region3: #{vit_encoder.1} parent=1 // loop_header
      %s34 = sphi 0, %s38
      %p35 = scmp.ge.s32.totalorder %s34, 4
      %s44 = sphi 0, %s46
      %s47 = sphi 0, %s44
      %s48 = sphi 0, %s47
      %s64 = sphi 0, %s48
      %s68 = sphi 0, %s68
      %s70 = sphi 0, %s68
      %s71 = sphi 0, %s70
      %s85 = sphi 0, %s71
      %s89 = sphi 0, %s89
      %s91 = sphi 0, %s89
      %s92 = sphi 0, %s91
      %s106 = sphi 0, %s92
      %s110 = sphi 0, %s110
      %s112 = sphi 0, %s110
      %s113 = sphi 0, %s112
      %s127 = sphi 0, %s113
      %s131 = sphi 0, %s131
      %s133 = sphi 0, %s131
      %s134 = sphi 0, %s133
      %s148 = sphi 0, %s134
      %s152 = sphi 0, %s152
      %s154 = sphi 0, %s152
      %s155 = sphi 0, %s154
      %s169 = sphi 0, %s155
      %s173 = sphi 0, %s173
      %s175 = sphi 0, %s173
      %s176 = sphi 0, %s175
      %s190 = sphi 0, %s176
      %s194 = sphi 0, %s194
      %s196 = sphi 0, %s194
      %s197 = sphi 0, %s196
      %s211 = sphi 0, %s197
      %s215 = sphi 0, %s215
      %s217 = sphi 0, %s215
      %s218 = sphi 0, %s217
      %s232 = sphi 0, %s218
      %s236 = sphi 0, %s236
      %s238 = sphi 0, %s236
      %s239 = sphi 0, %s238
      %s253 = sphi 0, %s239
      %s257 = sphi 0, %s257
      %s259 = sphi 0, %s257
      %s260 = sphi 0, %s259
      %s274 = sphi 0, %s260
      %s278 = sphi 0, %s278
      %s280 = sphi 0, %s278
      %s281 = sphi 0, %s280
      %s295 = sphi 0, %s281
      %s299 = sphi 0, %s299
      %s301 = sphi 0, %s299
      %s302 = sphi 0, %s301
      %s316 = sphi 0, %s302
      %s320 = sphi 0, %s320
      %s322 = sphi 0, %s320
      %s323 = sphi 0, %s322
      %s337 = sphi 0, %s323
      %s341 = sphi 0, %s341
      %s343 = sphi 0, %s341
      %s344 = sphi 0, %s343
      %s358 = sphi 0, %s344
      %s362 = sphi 0, %s362
      %s364 = sphi 0, %s362
      %s365 = sphi 0, %s364
      %s379 = sphi 0, %s365
      %s383 = sphi 0, %s383
      %s385 = sphi 0, %s383
      %s386 = sphi 0, %s385
      %s400 = sphi 0, %s386
      %s404 = sphi 0, %s404
      %s406 = sphi 0, %s404
      %s407 = sphi 0, %s406
      %s421 = sphi 0, %s407
      %s425 = sphi 0, %s425
      %s427 = sphi 0, %s425
      %s428 = sphi 0, %s427
      %s442 = sphi 0, %s428
      %s446 = sphi 0, %s446
      %s448 = sphi 0, %s446
      %s449 = sphi 0, %s448
      %s463 = sphi 0, %s449
      %s467 = sphi 0, %s467
      %s469 = sphi 0, %s467
      %s470 = sphi 0, %s469
      %s484 = sphi 0, %s470
      %s488 = sphi 0, %s488
      %s490 = sphi 0, %s488
      %s491 = sphi 0, %s490
      %s505 = sphi 0, %s491
      %s509 = sphi 0, %s509
      %s511 = sphi 0, %s509
      %s512 = sphi 0, %s511
      %s526 = sphi 0, %s512
      %s530 = sphi 0, %s530
      %s532 = sphi 0, %s530
      %s533 = sphi 0, %s532
      %s547 = sphi 0, %s533
      %s551 = sphi 0, %s551
      %s553 = sphi 0, %s551
      %s554 = sphi 0, %s553
      %s568 = sphi 0, %s554
      %s574 = sphi 0, %s576
      %s577 = sphi 0, %s574
      %s578 = sphi 0, %s577
      %s594 = sphi 0, %s578
    $region4: #{vit_encoder.1} parent=1 // loop_header_branch
      %37 = sbr.rel (%p35) target = $region8
    $region5: #{vit_encoder.1} parent=1 // loop_body
      %s39 = ssub.s32 %s34, 1
      %s40 = ssub.s32 %s34, 2
      %s41 = sadd.s32 %s34, 1
      %s42 = ssub.s32 %s34, %s41
      %p43 = scmp.eq.s32.totalorder %s42, 0
      %s45 = sadd.s32 %s44, 1
      %s46 = scalar_select %p43, %s44, %s45
      %p49 = pneg %p43
      %p50 = scmp.eq.s32.totalorder %s34, 1
      %p51 = por %p49, %p50
      %p52 = scmp.ne.s32.totalorder %s44, %s47
      %p53 = scmp.eq.s32.totalorder %s34, 0
      %p54 = por %p52, %p53
      %p55 = scmp.ne.s32.totalorder %s44, %s47
      %p56 = scmp.eq.s32.totalorder %s39, 1
      %p57 = por %p55, %p56
      %p58 = scmp.ne.s32.totalorder %s47, %s48
      %p59 = scmp.eq.s32.totalorder %s39, 0
      %p60 = por %p58, %p59
      %p61 = scmp.ne.s32.totalorder %s47, %s48
      %p62 = scmp.eq.s32.totalorder %s40, 1
      %p63 = por %p61, %p62
      %p65 = scmp.ne.s32.totalorder %s48, %s64
      %p66 = scmp.eq.s32.totalorder %s40, 0
      %p67 = por %p65, %p66
      %s69 = sadd.s32 %s68, 1
      %p72 = scmp.eq.s32.totalorder %s34, 1
      %p73 = scmp.ne.s32.totalorder %s68, %s70
      %p74 = scmp.eq.s32.totalorder %s34, 0
      %p75 = por %p73, %p74
      %p76 = scmp.ne.s32.totalorder %s68, %s70
      %p77 = scmp.eq.s32.totalorder %s39, 1
      %p78 = por %p76, %p77
      %p79 = scmp.ne.s32.totalorder %s70, %s71
      %p80 = scmp.eq.s32.totalorder %s39, 0
      %p81 = por %p79, %p80
      %p82 = scmp.ne.s32.totalorder %s70, %s71
      %p83 = scmp.eq.s32.totalorder %s40, 1
      %p84 = por %p82, %p83
      %p86 = scmp.ne.s32.totalorder %s71, %s85
      %p87 = scmp.eq.s32.totalorder %s40, 0
      %p88 = por %p86, %p87
      %s90 = sadd.s32 %s89, 1
      %p93 = scmp.eq.s32.totalorder %s34, 1
      %p94 = scmp.ne.s32.totalorder %s89, %s91
      %p95 = scmp.eq.s32.totalorder %s34, 0
      %p96 = por %p94, %p95
      %p97 = scmp.ne.s32.totalorder %s89, %s91
      %p98 = scmp.eq.s32.totalorder %s39, 1
      %p99 = por %p97, %p98
      %p100 = scmp.ne.s32.totalorder %s91, %s92
      %p101 = scmp.eq.s32.totalorder %s39, 0
      %p102 = por %p100, %p101
      %p103 = scmp.ne.s32.totalorder %s91, %s92
      %p104 = scmp.eq.s32.totalorder %s40, 1
      %p105 = por %p103, %p104
      %p107 = scmp.ne.s32.totalorder %s92, %s106
      %p108 = scmp.eq.s32.totalorder %s40, 0
      %p109 = por %p107, %p108
      %s111 = sadd.s32 %s110, 1
      %p114 = scmp.eq.s32.totalorder %s34, 1
      %p115 = scmp.ne.s32.totalorder %s110, %s112
      %p116 = scmp.eq.s32.totalorder %s34, 0
      %p117 = por %p115, %p116
      %p118 = scmp.ne.s32.totalorder %s110, %s112
      %p119 = scmp.eq.s32.totalorder %s39, 1
      %p120 = por %p118, %p119
      %p121 = scmp.ne.s32.totalorder %s112, %s113
      %p122 = scmp.eq.s32.totalorder %s39, 0
      %p123 = por %p121, %p122
      %p124 = scmp.ne.s32.totalorder %s112, %s113
      %p125 = scmp.eq.s32.totalorder %s40, 1
      %p126 = por %p124, %p125
      %p128 = scmp.ne.s32.totalorder %s113, %s127
      %p129 = scmp.eq.s32.totalorder %s40, 0
      %p130 = por %p128, %p129
      %s132 = sadd.s32 %s131, 1
      %p135 = scmp.eq.s32.totalorder %s34, 1
      %p136 = scmp.ne.s32.totalorder %s131, %s133
      %p137 = scmp.eq.s32.totalorder %s34, 0
      %p138 = por %p136, %p137
      %p139 = scmp.ne.s32.totalorder %s131, %s133
      %p140 = scmp.eq.s32.totalorder %s39, 1
      %p141 = por %p139, %p140
      %p142 = scmp.ne.s32.totalorder %s133, %s134
      %p143 = scmp.eq.s32.totalorder %s39, 0
      %p144 = por %p142, %p143
      %p145 = scmp.ne.s32.totalorder %s133, %s134
      %p146 = scmp.eq.s32.totalorder %s40, 1
      %p147 = por %p145, %p146
      %p149 = scmp.ne.s32.totalorder %s134, %s148
      %p150 = scmp.eq.s32.totalorder %s40, 0
      %p151 = por %p149, %p150
      %s153 = sadd.s32 %s152, 1
      %p156 = scmp.eq.s32.totalorder %s34, 1
      %p157 = scmp.ne.s32.totalorder %s152, %s154
      %p158 = scmp.eq.s32.totalorder %s34, 0
      %p159 = por %p157, %p158
      %p160 = scmp.ne.s32.totalorder %s152, %s154
      %p161 = scmp.eq.s32.totalorder %s39, 1
      %p162 = por %p160, %p161
      %p163 = scmp.ne.s32.totalorder %s154, %s155
      %p164 = scmp.eq.s32.totalorder %s39, 0
      %p165 = por %p163, %p164
      %p166 = scmp.ne.s32.totalorder %s154, %s155
      %p167 = scmp.eq.s32.totalorder %s40, 1
      %p168 = por %p166, %p167
      %p170 = scmp.ne.s32.totalorder %s155, %s169
      %p171 = scmp.eq.s32.totalorder %s40, 0
      %p172 = por %p170, %p171
      %s174 = sadd.s32 %s173, 1
      %p177 = scmp.eq.s32.totalorder %s34, 1
      %p178 = scmp.ne.s32.totalorder %s173, %s175
      %p179 = scmp.eq.s32.totalorder %s34, 0
      %p180 = por %p178, %p179
      %p181 = scmp.ne.s32.totalorder %s173, %s175
      %p182 = scmp.eq.s32.totalorder %s39, 1
      %p183 = por %p181, %p182
      %p184 = scmp.ne.s32.totalorder %s175, %s176
      %p185 = scmp.eq.s32.totalorder %s39, 0
      %p186 = por %p184, %p185
      %p187 = scmp.ne.s32.totalorder %s175, %s176
      %p188 = scmp.eq.s32.totalorder %s40, 1
      %p189 = por %p187, %p188
      %p191 = scmp.ne.s32.totalorder %s176, %s190
      %p192 = scmp.eq.s32.totalorder %s40, 0
      %p193 = por %p191, %p192
      %s195 = sadd.s32 %s194, 1
      %p198 = scmp.eq.s32.totalorder %s34, 1
      %p199 = scmp.ne.s32.totalorder %s194, %s196
      %p200 = scmp.eq.s32.totalorder %s34, 0
      %p201 = por %p199, %p200
      %p202 = scmp.ne.s32.totalorder %s194, %s196
      %p203 = scmp.eq.s32.totalorder %s39, 1
      %p204 = por %p202, %p203
      %p205 = scmp.ne.s32.totalorder %s196, %s197
      %p206 = scmp.eq.s32.totalorder %s39, 0
      %p207 = por %p205, %p206
      %p208 = scmp.ne.s32.totalorder %s196, %s197
      %p209 = scmp.eq.s32.totalorder %s40, 1
      %p210 = por %p208, %p209
      %p212 = scmp.ne.s32.totalorder %s197, %s211
      %p213 = scmp.eq.s32.totalorder %s40, 0
      %p214 = por %p212, %p213
      %s216 = sadd.s32 %s215, 1
      %p219 = scmp.eq.s32.totalorder %s34, 1
      %p220 = scmp.ne.s32.totalorder %s215, %s217
      %p221 = scmp.eq.s32.totalorder %s34, 0
      %p222 = por %p220, %p221
      %p223 = scmp.ne.s32.totalorder %s215, %s217
      %p224 = scmp.eq.s32.totalorder %s39, 1
      %p225 = por %p223, %p224
      %p226 = scmp.ne.s32.totalorder %s217, %s218
      %p227 = scmp.eq.s32.totalorder %s39, 0
      %p228 = por %p226, %p227
      %p229 = scmp.ne.s32.totalorder %s217, %s218
      %p230 = scmp.eq.s32.totalorder %s40, 1
      %p231 = por %p229, %p230
      %p233 = scmp.ne.s32.totalorder %s218, %s232
      %p234 = scmp.eq.s32.totalorder %s40, 0
      %p235 = por %p233, %p234
      %s237 = sadd.s32 %s236, 1
      %p240 = scmp.eq.s32.totalorder %s34, 1
      %p241 = scmp.ne.s32.totalorder %s236, %s238
      %p242 = scmp.eq.s32.totalorder %s34, 0
      %p243 = por %p241, %p242
      %p244 = scmp.ne.s32.totalorder %s236, %s238
      %p245 = scmp.eq.s32.totalorder %s39, 1
      %p246 = por %p244, %p245
      %p247 = scmp.ne.s32.totalorder %s238, %s239
      %p248 = scmp.eq.s32.totalorder %s39, 0
      %p249 = por %p247, %p248
      %p250 = scmp.ne.s32.totalorder %s238, %s239
      %p251 = scmp.eq.s32.totalorder %s40, 1
      %p252 = por %p250, %p251
      %p254 = scmp.ne.s32.totalorder %s239, %s253
      %p255 = scmp.eq.s32.totalorder %s40, 0
      %p256 = por %p254, %p255
      %s258 = sadd.s32 %s257, 1
      %p261 = scmp.eq.s32.totalorder %s34, 1
      %p262 = scmp.ne.s32.totalorder %s257, %s259
      %p263 = scmp.eq.s32.totalorder %s34, 0
      %p264 = por %p262, %p263
      %p265 = scmp.ne.s32.totalorder %s257, %s259
      %p266 = scmp.eq.s32.totalorder %s39, 1
      %p267 = por %p265, %p266
      %p268 = scmp.ne.s32.totalorder %s259, %s260
      %p269 = scmp.eq.s32.totalorder %s39, 0
      %p270 = por %p268, %p269
      %p271 = scmp.ne.s32.totalorder %s259, %s260
      %p272 = scmp.eq.s32.totalorder %s40, 1
      %p273 = por %p271, %p272
      %p275 = scmp.ne.s32.totalorder %s260, %s274
      %p276 = scmp.eq.s32.totalorder %s40, 0
      %p277 = por %p275, %p276
      %s279 = sadd.s32 %s278, 1
      %p282 = scmp.eq.s32.totalorder %s34, 1
      %p283 = scmp.ne.s32.totalorder %s278, %s280
      %p284 = scmp.eq.s32.totalorder %s34, 0
      %p285 = por %p283, %p284
      %p286 = scmp.ne.s32.totalorder %s278, %s280
      %p287 = scmp.eq.s32.totalorder %s39, 1
      %p288 = por %p286, %p287
      %p289 = scmp.ne.s32.totalorder %s280, %s281
      %p290 = scmp.eq.s32.totalorder %s39, 0
      %p291 = por %p289, %p290
      %p292 = scmp.ne.s32.totalorder %s280, %s281
      %p293 = scmp.eq.s32.totalorder %s40, 1
      %p294 = por %p292, %p293
      %p296 = scmp.ne.s32.totalorder %s281, %s295
      %p297 = scmp.eq.s32.totalorder %s40, 0
      %p298 = por %p296, %p297
      %s300 = sadd.s32 %s299, 1
      %p303 = scmp.eq.s32.totalorder %s34, 1
      %p304 = scmp.ne.s32.totalorder %s299, %s301
      %p305 = scmp.eq.s32.totalorder %s34, 0
      %p306 = por %p304, %p305
      %p307 = scmp.ne.s32.totalorder %s299, %s301
      %p308 = scmp.eq.s32.totalorder %s39, 1
      %p309 = por %p307, %p308
      %p310 = scmp.ne.s32.totalorder %s301, %s302
      %p311 = scmp.eq.s32.totalorder %s39, 0
      %p312 = por %p310, %p311
      %p313 = scmp.ne.s32.totalorder %s301, %s302
      %p314 = scmp.eq.s32.totalorder %s40, 1
      %p315 = por %p313, %p314
      %p317 = scmp.ne.s32.totalorder %s302, %s316
      %p318 = scmp.eq.s32.totalorder %s40, 0
      %p319 = por %p317, %p318
      %s321 = sadd.s32 %s320, 1
      %p324 = scmp.eq.s32.totalorder %s34, 1
      %p325 = scmp.ne.s32.totalorder %s320, %s322
      %p326 = scmp.eq.s32.totalorder %s34, 0
      %p327 = por %p325, %p326
      %p328 = scmp.ne.s32.totalorder %s320, %s322
      %p329 = scmp.eq.s32.totalorder %s39, 1
      %p330 = por %p328, %p329
      %p331 = scmp.ne.s32.totalorder %s322, %s323
      %p332 = scmp.eq.s32.totalorder %s39, 0
      %p333 = por %p331, %p332
      %p334 = scmp.ne.s32.totalorder %s322, %s323
      %p335 = scmp.eq.s32.totalorder %s40, 1
      %p336 = por %p334, %p335
      %p338 = scmp.ne.s32.totalorder %s323, %s337
      %p339 = scmp.eq.s32.totalorder %s40, 0
      %p340 = por %p338, %p339
      %s342 = sadd.s32 %s341, 1
      %p345 = scmp.eq.s32.totalorder %s34, 1
      %p346 = scmp.ne.s32.totalorder %s341, %s343
      %p347 = scmp.eq.s32.totalorder %s34, 0
      %p348 = por %p346, %p347
      %p349 = scmp.ne.s32.totalorder %s341, %s343
      %p350 = scmp.eq.s32.totalorder %s39, 1
      %p351 = por %p349, %p350
      %p352 = scmp.ne.s32.totalorder %s343, %s344
      %p353 = scmp.eq.s32.totalorder %s39, 0
      %p354 = por %p352, %p353
      %p355 = scmp.ne.s32.totalorder %s343, %s344
      %p356 = scmp.eq.s32.totalorder %s40, 1
      %p357 = por %p355, %p356
      %p359 = scmp.ne.s32.totalorder %s344, %s358
      %p360 = scmp.eq.s32.totalorder %s40, 0
      %p361 = por %p359, %p360
      %s363 = sadd.s32 %s362, 1
      %p366 = scmp.eq.s32.totalorder %s34, 1
      %p367 = scmp.ne.s32.totalorder %s362, %s364
      %p368 = scmp.eq.s32.totalorder %s34, 0
      %p369 = por %p367, %p368
      %p370 = scmp.ne.s32.totalorder %s362, %s364
      %p371 = scmp.eq.s32.totalorder %s39, 1
      %p372 = por %p370, %p371
      %p373 = scmp.ne.s32.totalorder %s364, %s365
      %p374 = scmp.eq.s32.totalorder %s39, 0
      %p375 = por %p373, %p374
      %p376 = scmp.ne.s32.totalorder %s364, %s365
      %p377 = scmp.eq.s32.totalorder %s40, 1
      %p378 = por %p376, %p377
      %p380 = scmp.ne.s32.totalorder %s365, %s379
      %p381 = scmp.eq.s32.totalorder %s40, 0
      %p382 = por %p380, %p381
      %s384 = sadd.s32 %s383, 1
      %p387 = scmp.eq.s32.totalorder %s34, 1
      %p388 = scmp.ne.s32.totalorder %s383, %s385
      %p389 = scmp.eq.s32.totalorder %s34, 0
      %p390 = por %p388, %p389
      %p391 = scmp.ne.s32.totalorder %s383, %s385
      %p392 = scmp.eq.s32.totalorder %s39, 1
      %p393 = por %p391, %p392
      %p394 = scmp.ne.s32.totalorder %s385, %s386
      %p395 = scmp.eq.s32.totalorder %s39, 0
      %p396 = por %p394, %p395
      %p397 = scmp.ne.s32.totalorder %s385, %s386
      %p398 = scmp.eq.s32.totalorder %s40, 1
      %p399 = por %p397, %p398
      %p401 = scmp.ne.s32.totalorder %s386, %s400
      %p402 = scmp.eq.s32.totalorder %s40, 0
      %p403 = por %p401, %p402
      %s405 = sadd.s32 %s404, 1
      %p408 = scmp.eq.s32.totalorder %s34, 1
      %p409 = scmp.ne.s32.totalorder %s404, %s406
      %p410 = scmp.eq.s32.totalorder %s34, 0
      %p411 = por %p409, %p410
      %p412 = scmp.ne.s32.totalorder %s404, %s406
      %p413 = scmp.eq.s32.totalorder %s39, 1
      %p414 = por %p412, %p413
      %p415 = scmp.ne.s32.totalorder %s406, %s407
      %p416 = scmp.eq.s32.totalorder %s39, 0
      %p417 = por %p415, %p416
      %p418 = scmp.ne.s32.totalorder %s406, %s407
      %p419 = scmp.eq.s32.totalorder %s40, 1
      %p420 = por %p418, %p419
      %p422 = scmp.ne.s32.totalorder %s407, %s421
      %p423 = scmp.eq.s32.totalorder %s40, 0
      %p424 = por %p422, %p423
      %s426 = sadd.s32 %s425, 1
      %p429 = scmp.eq.s32.totalorder %s34, 1
      %p430 = scmp.ne.s32.totalorder %s425, %s427
      %p431 = scmp.eq.s32.totalorder %s34, 0
      %p432 = por %p430, %p431
      %p433 = scmp.ne.s32.totalorder %s425, %s427
      %p434 = scmp.eq.s32.totalorder %s39, 1
      %p435 = por %p433, %p434
      %p436 = scmp.ne.s32.totalorder %s427, %s428
      %p437 = scmp.eq.s32.totalorder %s39, 0
      %p438 = por %p436, %p437
      %p439 = scmp.ne.s32.totalorder %s427, %s428
      %p440 = scmp.eq.s32.totalorder %s40, 1
      %p441 = por %p439, %p440
      %p443 = scmp.ne.s32.totalorder %s428, %s442
      %p444 = scmp.eq.s32.totalorder %s40, 0
      %p445 = por %p443, %p444
      %s447 = sadd.s32 %s446, 1
      %p450 = scmp.eq.s32.totalorder %s34, 1
      %p451 = scmp.ne.s32.totalorder %s446, %s448
      %p452 = scmp.eq.s32.totalorder %s34, 0
      %p453 = por %p451, %p452
      %p454 = scmp.ne.s32.totalorder %s446, %s448
      %p455 = scmp.eq.s32.totalorder %s39, 1
      %p456 = por %p454, %p455
      %p457 = scmp.ne.s32.totalorder %s448, %s449
      %p458 = scmp.eq.s32.totalorder %s39, 0
      %p459 = por %p457, %p458
      %p460 = scmp.ne.s32.totalorder %s448, %s449
      %p461 = scmp.eq.s32.totalorder %s40, 1
      %p462 = por %p460, %p461
      %p464 = scmp.ne.s32.totalorder %s449, %s463
      %p465 = scmp.eq.s32.totalorder %s40, 0
      %p466 = por %p464, %p465
      %s468 = sadd.s32 %s467, 1
      %p471 = scmp.eq.s32.totalorder %s34, 1
      %p472 = scmp.ne.s32.totalorder %s467, %s469
      %p473 = scmp.eq.s32.totalorder %s34, 0
      %p474 = por %p472, %p473
      %p475 = scmp.ne.s32.totalorder %s467, %s469
      %p476 = scmp.eq.s32.totalorder %s39, 1
      %p477 = por %p475, %p476
      %p478 = scmp.ne.s32.totalorder %s469, %s470
      %p479 = scmp.eq.s32.totalorder %s39, 0
      %p480 = por %p478, %p479
      %p481 = scmp.ne.s32.totalorder %s469, %s470
      %p482 = scmp.eq.s32.totalorder %s40, 1
      %p483 = por %p481, %p482
      %p485 = scmp.ne.s32.totalorder %s470, %s484
      %p486 = scmp.eq.s32.totalorder %s40, 0
      %p487 = por %p485, %p486
      %s489 = sadd.s32 %s488, 1
      %p492 = scmp.eq.s32.totalorder %s34, 1
      %p493 = scmp.ne.s32.totalorder %s488, %s490
      %p494 = scmp.eq.s32.totalorder %s34, 0
      %p495 = por %p493, %p494
      %p496 = scmp.ne.s32.totalorder %s488, %s490
      %p497 = scmp.eq.s32.totalorder %s39, 1
      %p498 = por %p496, %p497
      %p499 = scmp.ne.s32.totalorder %s490, %s491
      %p500 = scmp.eq.s32.totalorder %s39, 0
      %p501 = por %p499, %p500
      %p502 = scmp.ne.s32.totalorder %s490, %s491
      %p503 = scmp.eq.s32.totalorder %s40, 1
      %p504 = por %p502, %p503
      %p506 = scmp.ne.s32.totalorder %s491, %s505
      %p507 = scmp.eq.s32.totalorder %s40, 0
      %p508 = por %p506, %p507
      %s510 = sadd.s32 %s509, 1
      %p513 = scmp.eq.s32.totalorder %s34, 1
      %p514 = scmp.ne.s32.totalorder %s509, %s511
      %p515 = scmp.eq.s32.totalorder %s34, 0
      %p516 = por %p514, %p515
      %p517 = scmp.ne.s32.totalorder %s509, %s511
      %p518 = scmp.eq.s32.totalorder %s39, 1
      %p519 = por %p517, %p518
      %p520 = scmp.ne.s32.totalorder %s511, %s512
      %p521 = scmp.eq.s32.totalorder %s39, 0
      %p522 = por %p520, %p521
      %p523 = scmp.ne.s32.totalorder %s511, %s512
      %p524 = scmp.eq.s32.totalorder %s40, 1
      %p525 = por %p523, %p524
      %p527 = scmp.ne.s32.totalorder %s512, %s526
      %p528 = scmp.eq.s32.totalorder %s40, 0
      %p529 = por %p527, %p528
      %s531 = sadd.s32 %s530, 1
      %p534 = scmp.eq.s32.totalorder %s34, 1
      %p535 = scmp.ne.s32.totalorder %s530, %s532
      %p536 = scmp.eq.s32.totalorder %s34, 0
      %p537 = por %p535, %p536
      %p538 = scmp.ne.s32.totalorder %s530, %s532
      %p539 = scmp.eq.s32.totalorder %s39, 1
      %p540 = por %p538, %p539
      %p541 = scmp.ne.s32.totalorder %s532, %s533
      %p542 = scmp.eq.s32.totalorder %s39, 0
      %p543 = por %p541, %p542
      %p544 = scmp.ne.s32.totalorder %s532, %s533
      %p545 = scmp.eq.s32.totalorder %s40, 1
      %p546 = por %p544, %p545
      %p548 = scmp.ne.s32.totalorder %s533, %s547
      %p549 = scmp.eq.s32.totalorder %s40, 0
      %p550 = por %p548, %p549
      %s552 = sadd.s32 %s551, 1
      %p555 = scmp.eq.s32.totalorder %s34, 1
      %p556 = scmp.ne.s32.totalorder %s551, %s553
      %p557 = scmp.eq.s32.totalorder %s34, 0
      %p558 = por %p556, %p557
      %p559 = scmp.ne.s32.totalorder %s551, %s553
      %p560 = scmp.eq.s32.totalorder %s39, 1
      %p561 = por %p559, %p560
      %p562 = scmp.ne.s32.totalorder %s553, %s554
      %p563 = scmp.eq.s32.totalorder %s39, 0
      %p564 = por %p562, %p563
      %p565 = scmp.ne.s32.totalorder %s553, %s554
      %p566 = scmp.eq.s32.totalorder %s40, 1
      %p567 = por %p565, %p566
      %p569 = scmp.ne.s32.totalorder %s554, %s568
      %p570 = scmp.eq.s32.totalorder %s40, 0
      %p571 = por %p569, %p570
      %s572 = ssub.s32 %s34, %s41
      %p573 = scmp.eq.s32.totalorder %s572, 0
      %s575 = sadd.s32 %s574, 1
      %s576 = scalar_select %p573, %s574, %s575
      %p579 = pneg %p573
      %p580 = scmp.eq.s32.totalorder %s34, 1
      %p581 = por %p579, %p580
      %p582 = scmp.ne.s32.totalorder %s574, %s577
      %p583 = scmp.eq.s32.totalorder %s34, 0
      %p584 = por %p582, %p583
      %p585 = scmp.ne.s32.totalorder %s574, %s577
      %p586 = scmp.eq.s32.totalorder %s39, 1
      %p587 = por %p585, %p586
      %p588 = scmp.ne.s32.totalorder %s577, %s578
      %p589 = scmp.eq.s32.totalorder %s39, 0
      %p590 = por %p588, %p589
      %p591 = scmp.ne.s32.totalorder %s577, %s578
      %p592 = scmp.eq.s32.totalorder %s40, 1
      %p593 = por %p591, %p592
      %p595 = scmp.ne.s32.totalorder %s578, %s594
      %p596 = scmp.eq.s32.totalorder %s40, 0
      %p597 = por %p595, %p596
      %p598 = scmp.le.s32.totalorder 1, %s34
      %p599 = scmp.lt.s32.totalorder %s34, 3
      %p600 = pnand %p598, %p599
      %p601 = pneg %p600
      // Predicated region
      $region9: #{vit_encoder.1} parent=5 // pred_check
        _
      $region10: #{vit_encoder.1} parent=5 // pred_check_branch
        %603 = sbr.rel (%p600) target = $region12
      $region11: #{vit_encoder.1} parent=5 // pred_region
        %s604 = ssub.s32 %s34, 1
        // Predicated region
        $region13: #{vit_encoder.1} parent=11 // pred_check
          %p605 = pneg %p81
        $region14: #{vit_encoder.1} parent=11 // pred_check_branch
          %607 = sbr.rel (%p605) target = $region16
        $region15: #{vit_encoder.1} parent=11 // pred_region
          _
        $region16: #{vit_encoder.1} parent=11 // pred_fallthru
          _
        // Predicated region
        $region17: #{vit_encoder.1} parent=11 // pred_check
          %p608 = pneg %p102
        $region18: #{vit_encoder.1} parent=11 // pred_check_branch
          %610 = sbr.rel (%p608) target = $region20
        $region19: #{vit_encoder.1} parent=11 // pred_region
          _
        $region20: #{vit_encoder.1} parent=11 // pred_fallthru
          _
        // Predicated region
        $region21: #{vit_encoder.1} parent=11 // pred_check
          %p611 = pneg %p123
        $region22: #{vit_encoder.1} parent=11 // pred_check_branch
          %613 = sbr.rel (%p611) target = $region24
        $region23: #{vit_encoder.1} parent=11 // pred_region
          _
        $region24: #{vit_encoder.1} parent=11 // pred_fallthru
          _
        // Predicated region
        $region25: #{vit_encoder.1} parent=11 // pred_check
          %p614 = pneg %p144
        $region26: #{vit_encoder.1} parent=11 // pred_check_branch
          %616 = sbr.rel (%p614) target = $region28
        $region27: #{vit_encoder.1} parent=11 // pred_region
          _
        $region28: #{vit_encoder.1} parent=11 // pred_fallthru
          _
        // Predicated region
        $region29: #{vit_encoder.1} parent=11 // pred_check
          %p617 = pneg %p165
        $region30: #{vit_encoder.1} parent=11 // pred_check_branch
          %619 = sbr.rel (%p617) target = $region32
        $region31: #{vit_encoder.1} parent=11 // pred_region
          _
        $region32: #{vit_encoder.1} parent=11 // pred_fallthru
          _
        // Predicated region
        $region33: #{vit_encoder.1} parent=11 // pred_check
          %p620 = pneg %p186
        $region34: #{vit_encoder.1} parent=11 // pred_check_branch
          %622 = sbr.rel (%p620) target = $region36
        $region35: #{vit_encoder.1} parent=11 // pred_region
          _
        $region36: #{vit_encoder.1} parent=11 // pred_fallthru
          _
        // Predicated region
        $region37: #{vit_encoder.1} parent=11 // pred_check
          %p623 = pneg %p207
        $region38: #{vit_encoder.1} parent=11 // pred_check_branch
          %625 = sbr.rel (%p623) target = $region40
        $region39: #{vit_encoder.1} parent=11 // pred_region
          _
        $region40: #{vit_encoder.1} parent=11 // pred_fallthru
          _
        // Predicated region
        $region41: #{vit_encoder.1} parent=11 // pred_check
          %p626 = pneg %p228
        $region42: #{vit_encoder.1} parent=11 // pred_check_branch
          %628 = sbr.rel (%p626) target = $region44
        $region43: #{vit_encoder.1} parent=11 // pred_region
          _
        $region44: #{vit_encoder.1} parent=11 // pred_fallthru
          _
        // Predicated region
        $region45: #{vit_encoder.1} parent=11 // pred_check
          %p629 = pneg %p249
        $region46: #{vit_encoder.1} parent=11 // pred_check_branch
          %631 = sbr.rel (%p629) target = $region48
        $region47: #{vit_encoder.1} parent=11 // pred_region
          _
        $region48: #{vit_encoder.1} parent=11 // pred_fallthru
          _
        // Predicated region
        $region49: #{vit_encoder.1} parent=11 // pred_check
          %p632 = pneg %p270
        $region50: #{vit_encoder.1} parent=11 // pred_check_branch
          %634 = sbr.rel (%p632) target = $region52
        $region51: #{vit_encoder.1} parent=11 // pred_region
          _
        $region52: #{vit_encoder.1} parent=11 // pred_fallthru
          _
        // Predicated region
        $region53: #{vit_encoder.1} parent=11 // pred_check
          %p635 = pneg %p291
        $region54: #{vit_encoder.1} parent=11 // pred_check_branch
          %637 = sbr.rel (%p635) target = $region56
        $region55: #{vit_encoder.1} parent=11 // pred_region
          _
        $region56: #{vit_encoder.1} parent=11 // pred_fallthru
          _
        // Predicated region
        $region57: #{vit_encoder.1} parent=11 // pred_check
          %p638 = pneg %p312
        $region58: #{vit_encoder.1} parent=11 // pred_check_branch
          %640 = sbr.rel (%p638) target = $region60
        $region59: #{vit_encoder.1} parent=11 // pred_region
          _
        $region60: #{vit_encoder.1} parent=11 // pred_fallthru
          _
        // Predicated region
        $region61: #{vit_encoder.1} parent=11 // pred_check
          %p641 = pneg %p333
        $region62: #{vit_encoder.1} parent=11 // pred_check_branch
          %643 = sbr.rel (%p641) target = $region64
        $region63: #{vit_encoder.1} parent=11 // pred_region
          _
        $region64: #{vit_encoder.1} parent=11 // pred_fallthru
          _
        // Predicated region
        $region65: #{vit_encoder.1} parent=11 // pred_check
          %p644 = pneg %p354
        $region66: #{vit_encoder.1} parent=11 // pred_check_branch
          %646 = sbr.rel (%p644) target = $region68
        $region67: #{vit_encoder.1} parent=11 // pred_region
          _
        $region68: #{vit_encoder.1} parent=11 // pred_fallthru
          _
        // Predicated region
        $region69: #{vit_encoder.1} parent=11 // pred_check
          %p647 = pneg %p375
        $region70: #{vit_encoder.1} parent=11 // pred_check_branch
          %649 = sbr.rel (%p647) target = $region72
        $region71: #{vit_encoder.1} parent=11 // pred_region
          _
        $region72: #{vit_encoder.1} parent=11 // pred_fallthru
          _
        // Predicated region
        $region73: #{vit_encoder.1} parent=11 // pred_check
          %p650 = pneg %p396
        $region74: #{vit_encoder.1} parent=11 // pred_check_branch
          %652 = sbr.rel (%p650) target = $region76
        $region75: #{vit_encoder.1} parent=11 // pred_region
          _
        $region76: #{vit_encoder.1} parent=11 // pred_fallthru
          _
        // Predicated region
        $region77: #{vit_encoder.1} parent=11 // pred_check
          %p653 = pneg %p417
        $region78: #{vit_encoder.1} parent=11 // pred_check_branch
          %655 = sbr.rel (%p653) target = $region80
        $region79: #{vit_encoder.1} parent=11 // pred_region
          _
        $region80: #{vit_encoder.1} parent=11 // pred_fallthru
          _
        // Predicated region
        $region81: #{vit_encoder.1} parent=11 // pred_check
          %p656 = pneg %p438
        $region82: #{vit_encoder.1} parent=11 // pred_check_branch
          %658 = sbr.rel (%p656) target = $region84
        $region83: #{vit_encoder.1} parent=11 // pred_region
          _
        $region84: #{vit_encoder.1} parent=11 // pred_fallthru
          _
        // Predicated region
        $region85: #{vit_encoder.1} parent=11 // pred_check
          %p659 = pneg %p459
        $region86: #{vit_encoder.1} parent=11 // pred_check_branch
          %661 = sbr.rel (%p659) target = $region88
        $region87: #{vit_encoder.1} parent=11 // pred_region
          _
        $region88: #{vit_encoder.1} parent=11 // pred_fallthru
          _
        // Predicated region
        $region89: #{vit_encoder.1} parent=11 // pred_check
          %p662 = pneg %p480
        $region90: #{vit_encoder.1} parent=11 // pred_check_branch
          %664 = sbr.rel (%p662) target = $region92
        $region91: #{vit_encoder.1} parent=11 // pred_region
          _
        $region92: #{vit_encoder.1} parent=11 // pred_fallthru
          _
        // Predicated region
        $region93: #{vit_encoder.1} parent=11 // pred_check
          %p665 = pneg %p501
        $region94: #{vit_encoder.1} parent=11 // pred_check_branch
          %667 = sbr.rel (%p665) target = $region96
        $region95: #{vit_encoder.1} parent=11 // pred_region
          _
        $region96: #{vit_encoder.1} parent=11 // pred_fallthru
          _
        // Predicated region
        $region97: #{vit_encoder.1} parent=11 // pred_check
          %p668 = pneg %p522
        $region98: #{vit_encoder.1} parent=11 // pred_check_branch
          %670 = sbr.rel (%p668) target = $region100
        $region99: #{vit_encoder.1} parent=11 // pred_region
          _
        $region100: #{vit_encoder.1} parent=11 // pred_fallthru
          _
        // Predicated region
        $region101: #{vit_encoder.1} parent=11 // pred_check
          %p671 = pneg %p543
        $region102: #{vit_encoder.1} parent=11 // pred_check_branch
          %673 = sbr.rel (%p671) target = $region104
        $region103: #{vit_encoder.1} parent=11 // pred_region
          _
        $region104: #{vit_encoder.1} parent=11 // pred_fallthru
          _
        // Predicated region
        $region105: #{vit_encoder.1} parent=11 // pred_check
          %p674 = pneg %p564
        $region106: #{vit_encoder.1} parent=11 // pred_check_branch
          %676 = sbr.rel (%p674) target = $region108
        $region107: #{vit_encoder.1} parent=11 // pred_region
          _
        $region108: #{vit_encoder.1} parent=11 // pred_fallthru
          _
      $region12: #{vit_encoder.1} parent=5 // pred_fallthru
        _
      %p677 = scmp.lt.s32.totalorder %s34, 2
      // Predicated region
      $region109: #{vit_encoder.1} parent=5 // pred_check
        %p678 = pneg %p677
      $region110: #{vit_encoder.1} parent=5 // pred_check_branch
        %680 = sbr.rel (%p678) target = $region112
      $region111: #{vit_encoder.1} parent=5 // pred_region
        // Predicated region
        $region113: #{vit_encoder.1} parent=111 // pred_check
          %p681 = pneg %p54
        $region114: #{vit_encoder.1} parent=111 // pred_check_branch
          %683 = sbr.rel (%p681) target = $region116
        $region115: #{vit_encoder.1} parent=111 // pred_region
          %p684 = scmp.lt.s32.totalorder %s34, 1
          %s685 = scalar_select %p684, %s34, 1
          %s686 = smul.addr %s685, 8
          %s687 = scalar_lea.vmem %s0, %s686
        $region116: #{vit_encoder.1} parent=111 // pred_fallthru
          _
      $region112: #{vit_encoder.1} parent=5 // pred_fallthru
        _
      %p688 = scmp.le.s32.totalorder 1, %s34
      %p689 = scmp.lt.s32.totalorder %s34, 3
      %p690 = pnand %p688, %p689
      %p691 = pneg %p690
      // Predicated region
      $region117: #{vit_encoder.1} parent=5 // pred_check
        _
      $region118: #{vit_encoder.1} parent=5 // pred_check_branch
        %693 = sbr.rel (%p690) target = $region120
      $region119: #{vit_encoder.1} parent=5 // pred_region
        %s694 = ssub.s32 %s34, 1
        %p695 = scmp.lt.s32.totalorder %s39, 1
        %s696 = scalar_select %p695, %s39, 1
        %s697 = smul.addr %s696, 8
        %s698 = scalar_lea.vmem %s0, %s697
        %p699 = pneg %p60
        %p700 = pneg %p57
        %p701 = pneg %p81
        %p702 = pneg %p78
        %p703 = pneg %p102
        %p704 = pneg %p99
        %p705 = pneg %p123
        %p706 = pneg %p120
        %p707 = pneg %p144
        %p708 = pneg %p141
        %p709 = pneg %p165
        %p710 = pneg %p162
        %p711 = pneg %p186
        %p712 = pneg %p183
        %p713 = pneg %p207
        %p714 = pneg %p204
        %p715 = pneg %p228
        %p716 = pneg %p225
        %p717 = pneg %p249
        %p718 = pneg %p246
        %p719 = pneg %p270
        %p720 = pneg %p267
        %p721 = pneg %p291
        %p722 = pneg %p288
        %p723 = pneg %p312
        %p724 = pneg %p309
        %p725 = pneg %p333
        %p726 = pneg %p330
        %p727 = pneg %p354
        %p728 = pneg %p351
        %p729 = pneg %p375
        %p730 = pneg %p372
        %p731 = pneg %p396
        %p732 = pneg %p393
        %p733 = pneg %p417
        %p734 = pneg %p414
        %p735 = pneg %p438
        %p736 = pneg %p435
        %p737 = pneg %p459
        %p738 = pneg %p456
        %p739 = pneg %p480
        %p740 = pneg %p477
        %p741 = pneg %p501
        %p742 = pneg %p498
        %p743 = pneg %p522
        %p744 = pneg %p519
        %p745 = pneg %p543
        %p746 = pneg %p540
        %p747 = pneg %p564
        %p748 = pneg %p561
        %p749 = pneg %p590
        %p750 = pneg %p587
        %s751 = sand.u32 %s577, 1
        %s752 = scalar_lea.sflag [#allocation3], %s751
        %s753 = sand.u32 %s577, 1
        %s754 = smul.addr %s753, 8
        %s755 = scalar_lea.vmem [#allocation2], %s754
        %p756 = scmp.lt.s32.totalorder %s39, 1
        %s757 = scalar_select %p756, %s39, 1
        %s758 = smul.addr %s757, 8
        %s759 = scalar_lea.vmem %s0, %s758
        %v761 = vld [vmem:[%s759] sm:$0xff]
        %v762 = vld [vmem:[%s1] sm:$0x1]
        %v763 = vld [vmem:[%s2] sm:$0x1]
        %v764 = vld [vmem:[%s3] sm:$0xf]
        %v765 = vld [vmem:[%s3 + $0x4] sm:$0xf]
        %v766 = vld [vmem:[%s3 + $0x8] sm:$0xf]
        %v767 = vld [vmem:[%s3 + $0xc] sm:$0xf]
        %v768 = vld [vmem:[%s4] sm:$0x1]
        %v769 = vld [vmem:[%s5] sm:$0xf]
        %v770 = vld [vmem:[%s5 + $0x4] sm:$0xf]
        %v771 = vld [vmem:[%s5 + $0x8] sm:$0xf]
        %v772 = vld [vmem:[%s5 + $0xc] sm:$0xf]
        %v773 = vld [vmem:[%s6] sm:$0x1]
        %v774 = vld [vmem:[%s7] sm:$0x1]
        %v775 = vld [vmem:[%s8] sm:$0x1]
        %v776 = vld [vmem:[%s9] sm:$0xf]
        %v777 = vld [vmem:[%s9 + $0x4] sm:$0xf]
        %v778 = vld [vmem:[%s9 + $0x8] sm:$0xf]
        %v779 = vld [vmem:[%s9 + $0xc] sm:$0xf]
        %v780 = vld [vmem:[%s10] sm:$0x1]
        %v781 = vld [vmem:[%s11] sm:$0xf]
        %v782 = vld [vmem:[%s11 + $0x4] sm:$0xf]
        %v783 = vld [vmem:[%s11 + $0x8] sm:$0xf]
        %v784 = vld [vmem:[%s11 + $0xc] sm:$0xf]
        %v785 = vld [vmem:[%s11 + $0x10] sm:$0xf]
        %v786 = vld [vmem:[%s11 + $0x14] sm:$0xf]
        %v787 = vld [vmem:[%s11 + $0x18] sm:$0xf]
        %v788 = vld [vmem:[%s11 + $0x1c] sm:$0xf]
        %v789 = vld [vmem:[%s12] sm:$0x1]
        %vm790 = vcmask 261120
        %v791 = vsel %vm790, %v761, 0.0
        %792 = vadd.xlane.f32.xlu0 %v791
        %v793 = vpop.xlane.xlu0 %792
        %v794 = vrcp.pop 32.0
        %v795 = vmul.f32 32.0, %v794
        %v796 = vsub.f32 1.0, %v795
        %v797 = vmul.f32 %v794, %v796
        %v798 = vadd.f32 %v794, %v797
        %vm799 = vweird.f32 %v794
        %v800 = vsel %vm799, %v794, %v798
        %v801 = vmul.f32 %v793, %v800
        %v802 = vsub.f32 %v761, %v801
        %v803 = vmul.f32 %v802, %v802
        %v804 = vsel %vm790, %v803, 0.0
        %805 = vadd.xlane.f32.xlu0 %v804
        %v806 = vpop.xlane.xlu0 %805
        %v807 = vmul.f32 %v806, %v800
        %v808 = vadd.f32 %v807, 1e-05
        %v809 = vrsqrt.pop %v808
        %v810 = vmul.f32 %v809, %v808
        %v811 = vmul.f32 %v810, %v809
        %v812 = vmul.f32 0.5, %v811
        %v813 = vsub.f32 1.5, %v812
        %v814 = vmul.f32 %v809, %v813
        %vm815 = vweird.f32 %v808
        %vm816 = vweird.f32 %v809
        %vm817 = vmor %vm815, %vm816
        %v818 = vsel %vm817, %v809, %v814
        %v819 = vmul.f32 %v802, %v818
        %v821 = vperm.slane %v762, 0
        %v823 = vmul.f32 %v819, %v821
        %v825 = vperm.slane %v763, 0
        %v827 = vadd.f32 %v823, %v825
        %v828 = vpack.c.bf16 %v827, %v827
        %v830 = vperm.slane %v768, 0
        %v836 = vunpack.c.l.b16 %v764
        %v837 = vunpack.c.l.b16 %v765
        %v838 = vunpack.c.l.b16 %v766
        %v839 = vunpack.c.l.b16 %v767
        %v840 = vpack.c.b16 %v837, %v836
        %v841 = vpack.c.b16 %v839, %v838
        %v845 = vsel %vm790, %v828, 0
        %847 = vmatpush.bf16.msra.mxu0 0
        %848 = vmatpush.bf16.msra.mxu0 0
        %849 = vmatpush.bf16.msra.mxu0 0
        %850 = vmatpush.bf16.msra.mxu0 0
        %851 = vmatpush.bf16.msra.mxu0 0
        %852 = vmatpush.bf16.msra.mxu0 0
        %853 = vmatpush.bf16.msra.mxu0 %v841
        %854 = vmatpush.bf16.msra.mxu0 %v840
        %855 = vmatmul.bf16.gmra.mxu0 %v845
        %v856 = vpop.f32.mrf.mxu0
        %v857 = vadd.f32 %v830, %v856
        %v858 = vpop.f32.mrf.mxu0
        %859 = vdwg.mxu0
        %v860 = vpack.c.bf16 %v857, %v857
        %v862 = vunpack.c.l.b16 %v860
        %v863 = vpack.c.b16 %v862, %v862
        %864 = vrot.lane.b32.xlu0 %v863, 96
        %v865 = vpop.permute.xlu0 %864
        %vm866 = vcmask 64512
        %v868 = vsel %vm866, %v860, 0
        %v871 = vsel %vm866, %v865, 0
        %873 = vmatpush.bf16.xpose.msra.mxu0 0
        %874 = vmatpush.bf16.xpose.msra.mxu0 0
        %875 = vmatpush.bf16.xpose.msra.mxu0 0
        %876 = vmatpush.bf16.xpose.msra.mxu0 0
        %877 = vmatpush.bf16.xpose.msra.mxu0 0
        %878 = vmatpush.bf16.xpose.msra.mxu0 0
        %879 = vmatpush.bf16.xpose.msra.mxu0 0
        %880 = vmatpush.bf16.xpose.msra.mxu0 %v871
        %881 = vmatmul.bf16.gmra.mxu0 %v868
        %v882 = vpop.f32.mrf.mxu0
        %v883 = vadd.f32 0.0, %v882
        %v884 = vpop.f32.mrf.mxu0
        %885 = vdwg.mxu0
        %v886 = vmul.f32 %v883, 0.35355338
        %v887 = vsel %vm866, %v886, -inf
        %888 = vmax.xlane.f32.xlu0 %v887
        %v889 = vpop.xlane.xlu0 %888
        %v890 = vsub.f32 %v886, %v889
        %v891 = vmul.f32 %v890, 1.442695
        %v892 = vpow.pop %v891
        %v893 = vsel %vm866, %v892, 0.0
        %894 = vadd.xlane.f32.xlu0 %v893
        %v895 = vpop.xlane.xlu0 %894
        %v896 = vrcp.pop %v895
        %v897 = vmul.f32 %v892, %v896
        %v898 = vpack.c.bf16 %v897, %v897
        %899 = vrot.lane.b32.xlu0 %v863, 64
        %v900 = vpop.permute.xlu0 %899
        %v902 = vsel %vm866, %v898, 0
        %vm904 = vcmask 1043456
        %v906 = vsel %vm904, %v900, 0
        %908 = vmatpush.bf16.msra.mxu0 0
        %909 = vmatpush.bf16.msra.mxu0 0
        %910 = vmatpush.bf16.msra.mxu0 0
        %911 = vmatpush.bf16.msra.mxu0 0
        %912 = vmatpush.bf16.msra.mxu0 0
        %913 = vmatpush.bf16.msra.mxu0 0
        %914 = vmatpush.bf16.msra.mxu0 0
        %915 = vmatpush.bf16.msra.mxu0 %v906
        %916 = vmatmul.bf16.gmra.mxu0 %v902
        %v917 = vpop.f32.mrf.mxu0
        %v918 = vadd.f32 0.0, %v917
        %v919 = vpop.f32.mrf.mxu0
        %920 = vdwg.mxu0
        %v921 = vpack.c.bf16 %v918, %v918
        %922 = vrot.lane.b32.xlu0 %v863, 120
        %v923 = vpop.permute.xlu0 %922
        %924 = vrot.lane.b32.xlu0 %v863, 88
        %v925 = vpop.permute.xlu0 %924
        %v927 = vsel %vm866, %v923, 0
        %v930 = vsel %vm866, %v925, 0
        %932 = vmatpush.bf16.xpose.msra.mxu0 0
        %933 = vmatpush.bf16.xpose.msra.mxu0 0
        %934 = vmatpush.bf16.xpose.msra.mxu0 0
        %935 = vmatpush.bf16.xpose.msra.mxu0 0
        %936 = vmatpush.bf16.xpose.msra.mxu0 0
        %937 = vmatpush.bf16.xpose.msra.mxu0 0
        %938 = vmatpush.bf16.xpose.msra.mxu0 0
        %939 = vmatpush.bf16.xpose.msra.mxu0 %v930
        %940 = vmatmul.bf16.gmra.mxu0 %v927
        %v941 = vpop.f32.mrf.mxu0
        %v942 = vadd.f32 0.0, %v941
        %v943 = vpop.f32.mrf.mxu0
        %944 = vdwg.mxu0
        %v945 = vmul.f32 %v942, 0.35355338
        %v946 = vsel %vm866, %v945, -inf
        %947 = vmax.xlane.f32.xlu0 %v946
        %v948 = vpop.xlane.xlu0 %947
        %v949 = vsub.f32 %v945, %v948
        %v950 = vmul.f32 %v949, 1.442695
        %v951 = vpow.pop %v950
        %v952 = vsel %vm866, %v951, 0.0
        %953 = vadd.xlane.f32.xlu0 %v952
        %v954 = vpop.xlane.xlu0 %953
        %v955 = vrcp.pop %v954
        %v956 = vmul.f32 %v951, %v955
        %v957 = vpack.c.bf16 %v956, %v956
        %958 = vrot.lane.b32.xlu0 %v863, 56
        %v959 = vpop.permute.xlu0 %958
        %v961 = vsel %vm866, %v957, 0
        %v964 = vsel %vm904, %v959, 0
        %966 = vmatpush.bf16.msra.mxu0 0
        %967 = vmatpush.bf16.msra.mxu0 0
        %968 = vmatpush.bf16.msra.mxu0 0
        %969 = vmatpush.bf16.msra.mxu0 0
        %970 = vmatpush.bf16.msra.mxu0 0
        %971 = vmatpush.bf16.msra.mxu0 0
        %972 = vmatpush.bf16.msra.mxu0 0
        %973 = vmatpush.bf16.msra.mxu0 %v964
        %974 = vmatmul.bf16.gmra.mxu0 %v961
        %v975 = vpop.f32.mrf.mxu0
        %v976 = vadd.f32 0.0, %v975
        %v977 = vpop.f32.mrf.mxu0
        %978 = vdwg.mxu0
        %v979 = vpack.c.bf16 %v976, %v976
        %v981 = vsel %vm866, %v979, 0
        %v984 = vsel %vm904, %v770, 0
        %986 = vmatpush.bf16.msra.mxu0 0
        %987 = vmatpush.bf16.msra.mxu0 0
        %988 = vmatpush.bf16.msra.mxu0 0
        %989 = vmatpush.bf16.msra.mxu0 0
        %990 = vmatpush.bf16.msra.mxu0 0
        %991 = vmatpush.bf16.msra.mxu0 0
        %992 = vmatpush.bf16.msra.mxu0 0
        %993 = vmatpush.bf16.msra.mxu0 %v984
        %994 = vmatmul.bf16.gmra.mxu0 %v981
        %v995 = vpop.f32.mrf.mxu0
        %v996 = vadd.f32 0.0, %v995
        %v997 = vpop.f32.mrf.mxu0
        %998 = vdwg.mxu0
        %v1000 = vsel %vm866, %v921, 0
        %v1003 = vsel %vm904, %v769, 0
        %1005 = vmatpush.bf16.msra.mxu0 0
        %1006 = vmatpush.bf16.msra.mxu0 0
        %1007 = vmatpush.bf16.msra.mxu0 0
        %1008 = vmatpush.bf16.msra.mxu0 0
        %1009 = vmatpush.bf16.msra.mxu0 0
        %1010 = vmatpush.bf16.msra.mxu0 0
        %1011 = vmatpush.bf16.msra.mxu0 0
        %1012 = vmatpush.bf16.msra.mxu0 %v1003
        %1013 = vmatmul.bf16.gmra.mxu0 %v1000
        %v1014 = vpop.f32.mrf.mxu0
        %v1015 = vadd.f32 %v996, %v1014
        %v1016 = vpop.f32.mrf.mxu0
        %1017 = vdwg.mxu0
        %1018 = vrot.lane.b32.xlu0 %v863, 112
        %v1019 = vpop.permute.xlu0 %1018
        %1020 = vrot.lane.b32.xlu0 %v863, 80
        %v1021 = vpop.permute.xlu0 %1020
        %v1023 = vsel %vm866, %v1019, 0
        %v1026 = vsel %vm866, %v1021, 0
        %1028 = vmatpush.bf16.xpose.msra.mxu0 0
        %1029 = vmatpush.bf16.xpose.msra.mxu0 0
        %1030 = vmatpush.bf16.xpose.msra.mxu0 0
        %1031 = vmatpush.bf16.xpose.msra.mxu0 0
        %1032 = vmatpush.bf16.xpose.msra.mxu0 0
        %1033 = vmatpush.bf16.xpose.msra.mxu0 0
        %1034 = vmatpush.bf16.xpose.msra.mxu0 0
        %1035 = vmatpush.bf16.xpose.msra.mxu0 %v1026
        %1036 = vmatmul.bf16.gmra.mxu0 %v1023
        %v1037 = vpop.f32.mrf.mxu0
        %v1038 = vadd.f32 0.0, %v1037
        %v1039 = vpop.f32.mrf.mxu0
        %1040 = vdwg.mxu0
        %v1041 = vmul.f32 %v1038, 0.35355338
        %v1042 = vsel %vm866, %v1041, -inf
        %1043 = vmax.xlane.f32.xlu0 %v1042
        %v1044 = vpop.xlane.xlu0 %1043
        %v1045 = vsub.f32 %v1041, %v1044
        %v1046 = vmul.f32 %v1045, 1.442695
        %v1047 = vpow.pop %v1046
        %v1048 = vsel %vm866, %v1047, 0.0
        %1049 = vadd.xlane.f32.xlu0 %v1048
        %v1050 = vpop.xlane.xlu0 %1049
        %v1051 = vrcp.pop %v1050
        %v1052 = vmul.f32 %v1047, %v1051
        %v1053 = vpack.c.bf16 %v1052, %v1052
        %1054 = vrot.lane.b32.xlu0 %v863, 48
        %v1055 = vpop.permute.xlu0 %1054
        %v1057 = vsel %vm866, %v1053, 0
        %v1060 = vsel %vm904, %v1055, 0
        %1062 = vmatpush.bf16.msra.mxu0 0
        %1063 = vmatpush.bf16.msra.mxu0 0
        %1064 = vmatpush.bf16.msra.mxu0 0
        %1065 = vmatpush.bf16.msra.mxu0 0
        %1066 = vmatpush.bf16.msra.mxu0 0
        %1067 = vmatpush.bf16.msra.mxu0 0
        %1068 = vmatpush.bf16.msra.mxu0 0
        %1069 = vmatpush.bf16.msra.mxu0 %v1060
        %1070 = vmatmul.bf16.gmra.mxu0 %v1057
        %v1071 = vpop.f32.mrf.mxu0
        %v1072 = vadd.f32 0.0, %v1071
        %v1073 = vpop.f32.mrf.mxu0
        %1074 = vdwg.mxu0
        %v1075 = vpack.c.bf16 %v1072, %v1072
        %v1077 = vsel %vm866, %v1075, 0
        %v1080 = vsel %vm904, %v771, 0
        %1082 = vmatpush.bf16.msra.mxu0 0
        %1083 = vmatpush.bf16.msra.mxu0 0
        %1084 = vmatpush.bf16.msra.mxu0 0
        %1085 = vmatpush.bf16.msra.mxu0 0
        %1086 = vmatpush.bf16.msra.mxu0 0
        %1087 = vmatpush.bf16.msra.mxu0 0
        %1088 = vmatpush.bf16.msra.mxu0 0
        %1089 = vmatpush.bf16.msra.mxu0 %v1080
        %1090 = vmatmul.bf16.gmra.mxu0 %v1077
        %v1091 = vpop.f32.mrf.mxu0
        %v1092 = vadd.f32 0.0, %v1091
        %v1093 = vpop.f32.mrf.mxu0
        %1094 = vdwg.mxu0
        %v1095 = vadd.f32 %v1015, %v1092
        %1096 = vrot.lane.b32.xlu0 %v863, 104
        %v1097 = vpop.permute.xlu0 %1096
        %1098 = vrot.lane.b32.xlu0 %v863, 72
        %v1099 = vpop.permute.xlu0 %1098
        %v1101 = vsel %vm866, %v1097, 0
        %v1104 = vsel %vm866, %v1099, 0
        %1106 = vmatpush.bf16.xpose.msra.mxu0 0
        %1107 = vmatpush.bf16.xpose.msra.mxu0 0
        %1108 = vmatpush.bf16.xpose.msra.mxu0 0
        %1109 = vmatpush.bf16.xpose.msra.mxu0 0
        %1110 = vmatpush.bf16.xpose.msra.mxu0 0
        %1111 = vmatpush.bf16.xpose.msra.mxu0 0
        %1112 = vmatpush.bf16.xpose.msra.mxu0 0
        %1113 = vmatpush.bf16.xpose.msra.mxu0 %v1104
        %1114 = vmatmul.bf16.gmra.mxu0 %v1101
        %v1115 = vpop.f32.mrf.mxu0
        %v1116 = vadd.f32 0.0, %v1115
        %v1117 = vpop.f32.mrf.mxu0
        %1118 = vdwg.mxu0
        %v1119 = vmul.f32 %v1116, 0.35355338
        %v1120 = vsel %vm866, %v1119, -inf
        %1121 = vmax.xlane.f32.xlu0 %v1120
        %v1122 = vpop.xlane.xlu0 %1121
        %v1123 = vsub.f32 %v1119, %v1122
        %v1124 = vmul.f32 %v1123, 1.442695
        %v1125 = vpow.pop %v1124
        %v1126 = vsel %vm866, %v1125, 0.0
        %1127 = vadd.xlane.f32.xlu0 %v1126
        %v1128 = vpop.xlane.xlu0 %1127
        %v1129 = vrcp.pop %v1128
        %v1130 = vmul.f32 %v1125, %v1129
        %v1131 = vpack.c.bf16 %v1130, %v1130
        %1132 = vrot.lane.b32.xlu0 %v863, 40
        %v1133 = vpop.permute.xlu0 %1132
        %v1135 = vsel %vm866, %v1131, 0
        %v1138 = vsel %vm904, %v1133, 0
        %1140 = vmatpush.bf16.msra.mxu0 0
        %1141 = vmatpush.bf16.msra.mxu0 0
        %1142 = vmatpush.bf16.msra.mxu0 0
        %1143 = vmatpush.bf16.msra.mxu0 0
        %1144 = vmatpush.bf16.msra.mxu0 0
        %1145 = vmatpush.bf16.msra.mxu0 0
        %1146 = vmatpush.bf16.msra.mxu0 0
        %1147 = vmatpush.bf16.msra.mxu0 %v1138
        %1148 = vmatmul.bf16.gmra.mxu0 %v1135
        %v1149 = vpop.f32.mrf.mxu0
        %v1150 = vadd.f32 0.0, %v1149
        %v1151 = vpop.f32.mrf.mxu0
        %1152 = vdwg.mxu0
        %v1153 = vpack.c.bf16 %v1150, %v1150
        %v1155 = vsel %vm866, %v1153, 0
        %v1158 = vsel %vm904, %v772, 0
        %1160 = vmatpush.bf16.msra.mxu0 0
        %1161 = vmatpush.bf16.msra.mxu0 0
        %1162 = vmatpush.bf16.msra.mxu0 0
        %1163 = vmatpush.bf16.msra.mxu0 0
        %1164 = vmatpush.bf16.msra.mxu0 0
        %1165 = vmatpush.bf16.msra.mxu0 0
        %1166 = vmatpush.bf16.msra.mxu0 0
        %1167 = vmatpush.bf16.msra.mxu0 %v1158
        %1168 = vmatmul.bf16.gmra.mxu0 %v1155
        %v1169 = vpop.f32.mrf.mxu0
        %v1170 = vadd.f32 0.0, %v1169
        %v1171 = vpop.f32.mrf.mxu0
        %1172 = vdwg.mxu0
        %v1173 = vadd.f32 %v1095, %v1170
        %v1174 = vadd.f32 %v761, %v1173
        %v1176 = vperm.slane %v773, 0
        %v1178 = vadd.f32 %v1174, %v1176
        %v1179 = vsel %vm790, %v1178, 0.0
        %1180 = vadd.xlane.f32.xlu0 %v1179
        %v1181 = vpop.xlane.xlu0 %1180
        %v1182 = vmul.f32 %v1181, %v800
        %v1183 = vsub.f32 %v1178, %v1182
        %v1184 = vmul.f32 %v1183, %v1183
        %v1185 = vsel %vm790, %v1184, 0.0
        %1186 = vadd.xlane.f32.xlu0 %v1185
        %v1187 = vpop.xlane.xlu0 %1186
        %v1188 = vmul.f32 %v1187, %v800
        %v1189 = vadd.f32 %v1188, 1e-05
        %v1190 = vrsqrt.pop %v1189
        %v1191 = vmul.f32 %v1190, %v1189
        %v1192 = vmul.f32 %v1191, %v1190
        %v1193 = vmul.f32 0.5, %v1192
        %v1194 = vsub.f32 1.5, %v1193
        %v1195 = vmul.f32 %v1190, %v1194
        %vm1196 = vweird.f32 %v1189
        %vm1197 = vweird.f32 %v1190
        %vm1198 = vmor %vm1196, %vm1197
        %v1199 = vsel %vm1198, %v1190, %v1195
        %v1200 = vmul.f32 %v1183, %v1199
        %v1202 = vperm.slane %v774, 0
        %v1204 = vmul.f32 %v1200, %v1202
        %v1206 = vperm.slane %v775, 0
        %v1208 = vadd.f32 %v1204, %v1206
        %v1209 = vpack.c.bf16 %v1208, %v1208
        %v1211 = vperm.slane %v780, 0
        %v1217 = vunpack.c.l.b16 %v776
        %v1218 = vunpack.c.l.b16 %v777
        %v1219 = vunpack.c.l.b16 %v778
        %v1220 = vunpack.c.l.b16 %v779
        %v1221 = vpack.c.b16 %v1218, %v1217
        %v1222 = vpack.c.b16 %v1220, %v1219
        %v1226 = vsel %vm790, %v1209, 0
        %1228 = vmatpush.bf16.msra.mxu0 0
        %1229 = vmatpush.bf16.msra.mxu0 0
        %1230 = vmatpush.bf16.msra.mxu0 0
        %1231 = vmatpush.bf16.msra.mxu0 0
        %1232 = vmatpush.bf16.msra.mxu0 0
        %1233 = vmatpush.bf16.msra.mxu0 0
        %1234 = vmatpush.bf16.msra.mxu0 %v1222
        %1235 = vmatpush.bf16.msra.mxu0 %v1221
        %1236 = vmatmul.bf16.gmra.mxu0 %v1226
        %v1237 = vpop.f32.mrf.mxu0
        %v1238 = vadd.f32 %v1211, %v1237
        %v1239 = vpop.f32.mrf.mxu0
        %1240 = vdwg.mxu0
        %v1241 = vmul.f32 %v1238, 0.5
        %v1242 = vmul.f32 %v1238, 0.044715
        %v1243 = vmul.f32 %v1242, %v1238
        %v1244 = vmul.f32 %v1243, %v1238
        %v1245 = vadd.f32 %v1238, %v1244
        %v1246 = vmul.f32 %v1245, 0.7978846
        %v1247 = vtanh.pop %v1246
        %v1248 = vadd.f32 %v1247, 1.0
        %v1249 = vmul.f32 %v1241, %v1248
        %v1250 = vpack.c.bf16 %v1249, %v1249
        %v1252 = vperm.slane %v789, 0
        %v1262 = vunpack.c.l.b16 %v781
        %v1263 = vunpack.c.l.b16 %v782
        %v1264 = vunpack.c.l.b16 %v783
        %v1265 = vunpack.c.l.b16 %v784
        %v1266 = vunpack.c.l.b16 %v785
        %v1267 = vunpack.c.l.b16 %v786
        %v1268 = vunpack.c.l.b16 %v787
        %v1269 = vunpack.c.l.b16 %v788
        %v1270 = vpack.c.b16 %v1263, %v1262
        %v1271 = vpack.c.b16 %v1265, %v1264
        %v1272 = vpack.c.b16 %v1267, %v1266
        %v1273 = vpack.c.b16 %v1269, %v1268
        %vm1278 = vcmask 523264
        %v1280 = vsel %vm1278, %v1250, 0
        %1282 = vmatpush.bf16.msra.mxu0 0
        %1283 = vmatpush.bf16.msra.mxu0 0
        %1284 = vmatpush.bf16.msra.mxu0 0
        %1285 = vmatpush.bf16.msra.mxu0 0
        %1286 = vmatpush.bf16.msra.mxu0 %v1273
        %1287 = vmatpush.bf16.msra.mxu0 %v1272
        %1288 = vmatpush.bf16.msra.mxu0 %v1271
        %1289 = vmatpush.bf16.msra.mxu0 %v1270
        %1290 = vmatmul.bf16.gmra.mxu0 %v1280
        %v1291 = vpop.f32.mrf.mxu0
        %v1292 = vadd.f32 %v1252, %v1291
        %v1293 = vpop.f32.mrf.mxu0
        %1294 = vdwg.mxu0
        %v1295 = vadd.f32 %v1178, %v1292
        %v1296 = vld [vmem:[%s13] sm:$0x1]
        %v1297 = vld [vmem:[%s14] sm:$0x1]
        %v1298 = vld [vmem:[%s15] sm:$0xf]
        %v1299 = vld [vmem:[%s15 + $0x4] sm:$0xf]
        %v1300 = vld [vmem:[%s15 + $0x8] sm:$0xf]
        %v1301 = vld [vmem:[%s15 + $0xc] sm:$0xf]
        %v1302 = vld [vmem:[%s16] sm:$0x1]
        %v1303 = vld [vmem:[%s17] sm:$0xf]
        %v1304 = vld [vmem:[%s17 + $0x4] sm:$0xf]
        %v1305 = vld [vmem:[%s17 + $0x8] sm:$0xf]
        %v1306 = vld [vmem:[%s17 + $0xc] sm:$0xf]
        %v1307 = vld [vmem:[%s18] sm:$0x1]
        %v1308 = vld [vmem:[%s19] sm:$0x1]
        %v1309 = vld [vmem:[%s20] sm:$0x1]
        %v1310 = vld [vmem:[%s21] sm:$0xf]
        %v1311 = vld [vmem:[%s21 + $0x4] sm:$0xf]
        %v1312 = vld [vmem:[%s21 + $0x8] sm:$0xf]
        %v1313 = vld [vmem:[%s21 + $0xc] sm:$0xf]
        %v1314 = vld [vmem:[%s22] sm:$0x1]
        %v1315 = vld [vmem:[%s23] sm:$0xf]
        %v1316 = vld [vmem:[%s23 + $0x4] sm:$0xf]
        %v1317 = vld [vmem:[%s23 + $0x8] sm:$0xf]
        %v1318 = vld [vmem:[%s23 + $0xc] sm:$0xf]
        %v1319 = vld [vmem:[%s23 + $0x10] sm:$0xf]
        %v1320 = vld [vmem:[%s23 + $0x14] sm:$0xf]
        %v1321 = vld [vmem:[%s23 + $0x18] sm:$0xf]
        %v1322 = vld [vmem:[%s23 + $0x1c] sm:$0xf]
        %v1323 = vld [vmem:[%s24] sm:$0x1]
        %v1324 = vsel %vm790, %v1295, 0.0
        %1325 = vadd.xlane.f32.xlu0 %v1324
        %v1326 = vpop.xlane.xlu0 %1325
        %v1327 = vmul.f32 %v1326, %v800
        %v1328 = vsub.f32 %v1295, %v1327
        %v1329 = vmul.f32 %v1328, %v1328
        %v1330 = vsel %vm790, %v1329, 0.0
        %1331 = vadd.xlane.f32.xlu0 %v1330
        %v1332 = vpop.xlane.xlu0 %1331
        %v1333 = vmul.f32 %v1332, %v800
        %v1334 = vadd.f32 %v1333, 1e-05
        %v1335 = vrsqrt.pop %v1334
        %v1336 = vmul.f32 %v1335, %v1334
        %v1337 = vmul.f32 %v1336, %v1335
        %v1338 = vmul.f32 0.5, %v1337
        %v1339 = vsub.f32 1.5, %v1338
        %v1340 = vmul.f32 %v1335, %v1339
        %vm1341 = vweird.f32 %v1334
        %vm1342 = vweird.f32 %v1335
        %vm1343 = vmor %vm1341, %vm1342
        %v1344 = vsel %vm1343, %v1335, %v1340
        %v1345 = vmul.f32 %v1328, %v1344
        %v1347 = vperm.slane %v1296, 0
        %v1349 = vmul.f32 %v1345, %v1347
        %v1351 = vperm.slane %v1297, 0
        %v1353 = vadd.f32 %v1349, %v1351
        %v1354 = vpack.c.bf16 %v1353, %v1353
        %v1356 = vperm.slane %v1302, 0
        %v1362 = vunpack.c.l.b16 %v1298
        %v1363 = vunpack.c.l.b16 %v1299
        %v1364 = vunpack.c.l.b16 %v1300
        %v1365 = vunpack.c.l.b16 %v1301
        %v1366 = vpack.c.b16 %v1363, %v1362
        %v1367 = vpack.c.b16 %v1365, %v1364
        %v1371 = vsel %vm790, %v1354, 0
        %1373 = vmatpush.bf16.msra.mxu0 0
        %1374 = vmatpush.bf16.msra.mxu0 0
        %1375 = vmatpush.bf16.msra.mxu0 0
        %1376 = vmatpush.bf16.msra.mxu0 0
        %1377 = vmatpush.bf16.msra.mxu0 0
        %1378 = vmatpush.bf16.msra.mxu0 0
        %1379 = vmatpush.bf16.msra.mxu0 %v1367
        %1380 = vmatpush.bf16.msra.mxu0 %v1366
        %1381 = vmatmul.bf16.gmra.mxu0 %v1371
        %v1382 = vpop.f32.mrf.mxu0
        %v1383 = vadd.f32 %v1356, %v1382
        %v1384 = vpop.f32.mrf.mxu0
        %1385 = vdwg.mxu0
        %v1386 = vpack.c.bf16 %v1383, %v1383
        %v1388 = vunpack.c.l.b16 %v1386
        %v1389 = vpack.c.b16 %v1388, %v1388
        %1390 = vrot.lane.b32.xlu0 %v1389, 96
        %v1391 = vpop.permute.xlu0 %1390
        %v1393 = vsel %vm866, %v1386, 0
        %v1396 = vsel %vm866, %v1391, 0
        %1398 = vmatpush.bf16.xpose.msra.mxu0 0
        %1399 = vmatpush.bf16.xpose.msra.mxu0 0
        %1400 = vmatpush.bf16.xpose.msra.mxu0 0
        %1401 = vmatpush.bf16.xpose.msra.mxu0 0
        %1402 = vmatpush.bf16.xpose.msra.mxu0 0
        %1403 = vmatpush.bf16.xpose.msra.mxu0 0
        %1404 = vmatpush.bf16.xpose.msra.mxu0 0
        %1405 = vmatpush.bf16.xpose.msra.mxu0 %v1396
        %1406 = vmatmul.bf16.gmra.mxu0 %v1393
        %v1407 = vpop.f32.mrf.mxu0
        %v1408 = vadd.f32 0.0, %v1407
        %v1409 = vpop.f32.mrf.mxu0
        %1410 = vdwg.mxu0
        %v1411 = vmul.f32 %v1408, 0.35355338
        %v1412 = vsel %vm866, %v1411, -inf
        %1413 = vmax.xlane.f32.xlu0 %v1412
        %v1414 = vpop.xlane.xlu0 %1413
        %v1415 = vsub.f32 %v1411, %v1414
        %v1416 = vmul.f32 %v1415, 1.442695
        %v1417 = vpow.pop %v1416
        %v1418 = vsel %vm866, %v1417, 0.0
        %1419 = vadd.xlane.f32.xlu0 %v1418
        %v1420 = vpop.xlane.xlu0 %1419
        %v1421 = vrcp.pop %v1420
        %v1422 = vmul.f32 %v1417, %v1421
        %v1423 = vpack.c.bf16 %v1422, %v1422
        %1424 = vrot.lane.b32.xlu0 %v1389, 64
        %v1425 = vpop.permute.xlu0 %1424
        %v1427 = vsel %vm866, %v1423, 0
        %v1430 = vsel %vm904, %v1425, 0
        %1432 = vmatpush.bf16.msra.mxu0 0
        %1433 = vmatpush.bf16.msra.mxu0 0
        %1434 = vmatpush.bf16.msra.mxu0 0
        %1435 = vmatpush.bf16.msra.mxu0 0
        %1436 = vmatpush.bf16.msra.mxu0 0
        %1437 = vmatpush.bf16.msra.mxu0 0
        %1438 = vmatpush.bf16.msra.mxu0 0
        %1439 = vmatpush.bf16.msra.mxu0 %v1430
        %1440 = vmatmul.bf16.gmra.mxu0 %v1427
        %v1441 = vpop.f32.mrf.mxu0
        %v1442 = vadd.f32 0.0, %v1441
        %v1443 = vpop.f32.mrf.mxu0
        %1444 = vdwg.mxu0
        %v1445 = vpack.c.bf16 %v1442, %v1442
        %1446 = vrot.lane.b32.xlu0 %v1389, 120
        %v1447 = vpop.permute.xlu0 %1446
        %1448 = vrot.lane.b32.xlu0 %v1389, 88
        %v1449 = vpop.permute.xlu0 %1448
        %v1451 = vsel %vm866, %v1447, 0
        %v1454 = vsel %vm866, %v1449, 0
        %1456 = vmatpush.bf16.xpose.msra.mxu0 0
        %1457 = vmatpush.bf16.xpose.msra.mxu0 0
        %1458 = vmatpush.bf16.xpose.msra.mxu0 0
        %1459 = vmatpush.bf16.xpose.msra.mxu0 0
        %1460 = vmatpush.bf16.xpose.msra.mxu0 0
        %1461 = vmatpush.bf16.xpose.msra.mxu0 0
        %1462 = vmatpush.bf16.xpose.msra.mxu0 0
        %1463 = vmatpush.bf16.xpose.msra.mxu0 %v1454
        %1464 = vmatmul.bf16.gmra.mxu0 %v1451
        %v1465 = vpop.f32.mrf.mxu0
        %v1466 = vadd.f32 0.0, %v1465
        %v1467 = vpop.f32.mrf.mxu0
        %1468 = vdwg.mxu0
        %v1469 = vmul.f32 %v1466, 0.35355338
        %v1470 = vsel %vm866, %v1469, -inf
        %1471 = vmax.xlane.f32.xlu0 %v1470
        %v1472 = vpop.xlane.xlu0 %1471
        %v1473 = vsub.f32 %v1469, %v1472
        %v1474 = vmul.f32 %v1473, 1.442695
        %v1475 = vpow.pop %v1474
        %v1476 = vsel %vm866, %v1475, 0.0
        %1477 = vadd.xlane.f32.xlu0 %v1476
        %v1478 = vpop.xlane.xlu0 %1477
        %v1479 = vrcp.pop %v1478
        %v1480 = vmul.f32 %v1475, %v1479
        %v1481 = vpack.c.bf16 %v1480, %v1480
        %1482 = vrot.lane.b32.xlu0 %v1389, 56
        %v1483 = vpop.permute.xlu0 %1482
        %v1485 = vsel %vm866, %v1481, 0
        %v1488 = vsel %vm904, %v1483, 0
        %1490 = vmatpush.bf16.msra.mxu0 0
        %1491 = vmatpush.bf16.msra.mxu0 0
        %1492 = vmatpush.bf16.msra.mxu0 0
        %1493 = vmatpush.bf16.msra.mxu0 0
        %1494 = vmatpush.bf16.msra.mxu0 0
        %1495 = vmatpush.bf16.msra.mxu0 0
        %1496 = vmatpush.bf16.msra.mxu0 0
        %1497 = vmatpush.bf16.msra.mxu0 %v1488
        %1498 = vmatmul.bf16.gmra.mxu0 %v1485
        %v1499 = vpop.f32.mrf.mxu0
        %v1500 = vadd.f32 0.0, %v1499
        %v1501 = vpop.f32.mrf.mxu0
        %1502 = vdwg.mxu0
        %v1503 = vpack.c.bf16 %v1500, %v1500
        %v1505 = vsel %vm866, %v1503, 0
        %v1508 = vsel %vm904, %v1304, 0
        %1510 = vmatpush.bf16.msra.mxu0 0
        %1511 = vmatpush.bf16.msra.mxu0 0
        %1512 = vmatpush.bf16.msra.mxu0 0
        %1513 = vmatpush.bf16.msra.mxu0 0
        %1514 = vmatpush.bf16.msra.mxu0 0
        %1515 = vmatpush.bf16.msra.mxu0 0
        %1516 = vmatpush.bf16.msra.mxu0 0
        %1517 = vmatpush.bf16.msra.mxu0 %v1508
        %1518 = vmatmul.bf16.gmra.mxu0 %v1505
        %v1519 = vpop.f32.mrf.mxu0
        %v1520 = vadd.f32 0.0, %v1519
        %v1521 = vpop.f32.mrf.mxu0
        %1522 = vdwg.mxu0
        %v1524 = vsel %vm866, %v1445, 0
        %v1527 = vsel %vm904, %v1303, 0
        %1529 = vmatpush.bf16.msra.mxu0 0
        %1530 = vmatpush.bf16.msra.mxu0 0
        %1531 = vmatpush.bf16.msra.mxu0 0
        %1532 = vmatpush.bf16.msra.mxu0 0
        %1533 = vmatpush.bf16.msra.mxu0 0
        %1534 = vmatpush.bf16.msra.mxu0 0
        %1535 = vmatpush.bf16.msra.mxu0 0
        %1536 = vmatpush.bf16.msra.mxu0 %v1527
        %1537 = vmatmul.bf16.gmra.mxu0 %v1524
        %v1538 = vpop.f32.mrf.mxu0
        %v1539 = vadd.f32 %v1520, %v1538
        %v1540 = vpop.f32.mrf.mxu0
        %1541 = vdwg.mxu0
        %1542 = vrot.lane.b32.xlu0 %v1389, 112
        %v1543 = vpop.permute.xlu0 %1542
        %1544 = vrot.lane.b32.xlu0 %v1389, 80
        %v1545 = vpop.permute.xlu0 %1544
        %v1547 = vsel %vm866, %v1543, 0
        %v1550 = vsel %vm866, %v1545, 0
        %1552 = vmatpush.bf16.xpose.msra.mxu0 0
        %1553 = vmatpush.bf16.xpose.msra.mxu0 0
        %1554 = vmatpush.bf16.xpose.msra.mxu0 0
        %1555 = vmatpush.bf16.xpose.msra.mxu0 0
        %1556 = vmatpush.bf16.xpose.msra.mxu0 0
        %1557 = vmatpush.bf16.xpose.msra.mxu0 0
        %1558 = vmatpush.bf16.xpose.msra.mxu0 0
        %1559 = vmatpush.bf16.xpose.msra.mxu0 %v1550
        %1560 = vmatmul.bf16.gmra.mxu0 %v1547
        %v1561 = vpop.f32.mrf.mxu0
        %v1562 = vadd.f32 0.0, %v1561
        %v1563 = vpop.f32.mrf.mxu0
        %1564 = vdwg.mxu0
        %v1565 = vmul.f32 %v1562, 0.35355338
        %v1566 = vsel %vm866, %v1565, -inf
        %1567 = vmax.xlane.f32.xlu0 %v1566
        %v1568 = vpop.xlane.xlu0 %1567
        %v1569 = vsub.f32 %v1565, %v1568
        %v1570 = vmul.f32 %v1569, 1.442695
        %v1571 = vpow.pop %v1570
        %v1572 = vsel %vm866, %v1571, 0.0
        %1573 = vadd.xlane.f32.xlu0 %v1572
        %v1574 = vpop.xlane.xlu0 %1573
        %v1575 = vrcp.pop %v1574
        %v1576 = vmul.f32 %v1571, %v1575
        %v1577 = vpack.c.bf16 %v1576, %v1576
        %1578 = vrot.lane.b32.xlu0 %v1389, 48
        %v1579 = vpop.permute.xlu0 %1578
        %v1581 = vsel %vm866, %v1577, 0
        %v1584 = vsel %vm904, %v1579, 0
        %1586 = vmatpush.bf16.msra.mxu0 0
        %1587 = vmatpush.bf16.msra.mxu0 0
        %1588 = vmatpush.bf16.msra.mxu0 0
        %1589 = vmatpush.bf16.msra.mxu0 0
        %1590 = vmatpush.bf16.msra.mxu0 0
        %1591 = vmatpush.bf16.msra.mxu0 0
        %1592 = vmatpush.bf16.msra.mxu0 0
        %1593 = vmatpush.bf16.msra.mxu0 %v1584
        %1594 = vmatmul.bf16.gmra.mxu0 %v1581
        %v1595 = vpop.f32.mrf.mxu0
        %v1596 = vadd.f32 0.0, %v1595
        %v1597 = vpop.f32.mrf.mxu0
        %1598 = vdwg.mxu0
        %v1599 = vpack.c.bf16 %v1596, %v1596
        %v1601 = vsel %vm866, %v1599, 0
        %v1604 = vsel %vm904, %v1305, 0
        %1606 = vmatpush.bf16.msra.mxu0 0
        %1607 = vmatpush.bf16.msra.mxu0 0
        %1608 = vmatpush.bf16.msra.mxu0 0
        %1609 = vmatpush.bf16.msra.mxu0 0
        %1610 = vmatpush.bf16.msra.mxu0 0
        %1611 = vmatpush.bf16.msra.mxu0 0
        %1612 = vmatpush.bf16.msra.mxu0 0
        %1613 = vmatpush.bf16.msra.mxu0 %v1604
        %1614 = vmatmul.bf16.gmra.mxu0 %v1601
        %v1615 = vpop.f32.mrf.mxu0
        %v1616 = vadd.f32 0.0, %v1615
        %v1617 = vpop.f32.mrf.mxu0
        %1618 = vdwg.mxu0
        %v1619 = vadd.f32 %v1539, %v1616
        %1620 = vrot.lane.b32.xlu0 %v1389, 104
        %v1621 = vpop.permute.xlu0 %1620
        %1622 = vrot.lane.b32.xlu0 %v1389, 72
        %v1623 = vpop.permute.xlu0 %1622
        %v1625 = vsel %vm866, %v1621, 0
        %v1628 = vsel %vm866, %v1623, 0
        %1630 = vmatpush.bf16.xpose.msra.mxu0 0
        %1631 = vmatpush.bf16.xpose.msra.mxu0 0
        %1632 = vmatpush.bf16.xpose.msra.mxu0 0
        %1633 = vmatpush.bf16.xpose.msra.mxu0 0
        %1634 = vmatpush.bf16.xpose.msra.mxu0 0
        %1635 = vmatpush.bf16.xpose.msra.mxu0 0
        %1636 = vmatpush.bf16.xpose.msra.mxu0 0
        %1637 = vmatpush.bf16.xpose.msra.mxu0 %v1628
        %1638 = vmatmul.bf16.gmra.mxu0 %v1625
        %v1639 = vpop.f32.mrf.mxu0
        %v1640 = vadd.f32 0.0, %v1639
        %v1641 = vpop.f32.mrf.mxu0
        %1642 = vdwg.mxu0
        %v1643 = vmul.f32 %v1640, 0.35355338
        %v1644 = vsel %vm866, %v1643, -inf
        %1645 = vmax.xlane.f32.xlu0 %v1644
        %v1646 = vpop.xlane.xlu0 %1645
        %v1647 = vsub.f32 %v1643, %v1646
        %v1648 = vmul.f32 %v1647, 1.442695
        %v1649 = vpow.pop %v1648
        %v1650 = vsel %vm866, %v1649, 0.0
        %1651 = vadd.xlane.f32.xlu0 %v1650
        %v1652 = vpop.xlane.xlu0 %1651
        %v1653 = vrcp.pop %v1652
        %v1654 = vmul.f32 %v1649, %v1653
        %v1655 = vpack.c.bf16 %v1654, %v1654
        %1656 = vrot.lane.b32.xlu0 %v1389, 40
        %v1657 = vpop.permute.xlu0 %1656
        %v1659 = vsel %vm866, %v1655, 0
        %v1662 = vsel %vm904, %v1657, 0
        %1664 = vmatpush.bf16.msra.mxu0 0
        %1665 = vmatpush.bf16.msra.mxu0 0
        %1666 = vmatpush.bf16.msra.mxu0 0
        %1667 = vmatpush.bf16.msra.mxu0 0
        %1668 = vmatpush.bf16.msra.mxu0 0
        %1669 = vmatpush.bf16.msra.mxu0 0
        %1670 = vmatpush.bf16.msra.mxu0 0
        %1671 = vmatpush.bf16.msra.mxu0 %v1662
        %1672 = vmatmul.bf16.gmra.mxu0 %v1659
        %v1673 = vpop.f32.mrf.mxu0
        %v1674 = vadd.f32 0.0, %v1673
        %v1675 = vpop.f32.mrf.mxu0
        %1676 = vdwg.mxu0
        %v1677 = vpack.c.bf16 %v1674, %v1674
        %v1679 = vsel %vm866, %v1677, 0
        %v1682 = vsel %vm904, %v1306, 0
        %1684 = vmatpush.bf16.msra.mxu0 0
        %1685 = vmatpush.bf16.msra.mxu0 0
        %1686 = vmatpush.bf16.msra.mxu0 0
        %1687 = vmatpush.bf16.msra.mxu0 0
        %1688 = vmatpush.bf16.msra.mxu0 0
        %1689 = vmatpush.bf16.msra.mxu0 0
        %1690 = vmatpush.bf16.msra.mxu0 0
        %1691 = vmatpush.bf16.msra.mxu0 %v1682
        %1692 = vmatmul.bf16.gmra.mxu0 %v1679
        %v1693 = vpop.f32.mrf.mxu0
        %v1694 = vadd.f32 0.0, %v1693
        %v1695 = vpop.f32.mrf.mxu0
        %1696 = vdwg.mxu0
        %v1697 = vadd.f32 %v1619, %v1694
        %v1698 = vadd.f32 %v1295, %v1697
        %v1700 = vperm.slane %v1307, 0
        %v1702 = vadd.f32 %v1698, %v1700
        %v1703 = vsel %vm790, %v1702, 0.0
        %1704 = vadd.xlane.f32.xlu0 %v1703
        %v1705 = vpop.xlane.xlu0 %1704
        %v1706 = vmul.f32 %v1705, %v800
        %v1707 = vsub.f32 %v1702, %v1706
        %v1708 = vmul.f32 %v1707, %v1707
        %v1709 = vsel %vm790, %v1708, 0.0
        %1710 = vadd.xlane.f32.xlu0 %v1709
        %v1711 = vpop.xlane.xlu0 %1710
        %v1712 = vmul.f32 %v1711, %v800
        %v1713 = vadd.f32 %v1712, 1e-05
        %v1714 = vrsqrt.pop %v1713
        %v1715 = vmul.f32 %v1714, %v1713
        %v1716 = vmul.f32 %v1715, %v1714
        %v1717 = vmul.f32 0.5, %v1716
        %v1718 = vsub.f32 1.5, %v1717
        %v1719 = vmul.f32 %v1714, %v1718
        %vm1720 = vweird.f32 %v1713
        %vm1721 = vweird.f32 %v1714
        %vm1722 = vmor %vm1720, %vm1721
        %v1723 = vsel %vm1722, %v1714, %v1719
        %v1724 = vmul.f32 %v1707, %v1723
        %v1726 = vperm.slane %v1308, 0
        %v1728 = vmul.f32 %v1724, %v1726
        %v1730 = vperm.slane %v1309, 0
        %v1732 = vadd.f32 %v1728, %v1730
        %v1733 = vpack.c.bf16 %v1732, %v1732
        %v1735 = vperm.slane %v1314, 0
        %v1741 = vunpack.c.l.b16 %v1310
        %v1742 = vunpack.c.l.b16 %v1311
        %v1743 = vunpack.c.l.b16 %v1312
        %v1744 = vunpack.c.l.b16 %v1313
        %v1745 = vpack.c.b16 %v1742, %v1741
        %v1746 = vpack.c.b16 %v1744, %v1743
        %v1750 = vsel %vm790, %v1733, 0
        %1752 = vmatpush.bf16.msra.mxu0 0
        %1753 = vmatpush.bf16.msra.mxu0 0
        %1754 = vmatpush.bf16.msra.mxu0 0
        %1755 = vmatpush.bf16.msra.mxu0 0
        %1756 = vmatpush.bf16.msra.mxu0 0
        %1757 = vmatpush.bf16.msra.mxu0 0
        %1758 = vmatpush.bf16.msra.mxu0 %v1746
        %1759 = vmatpush.bf16.msra.mxu0 %v1745
        %1760 = vmatmul.bf16.gmra.mxu0 %v1750
        %v1761 = vpop.f32.mrf.mxu0
        %v1762 = vadd.f32 %v1735, %v1761
        %v1763 = vpop.f32.mrf.mxu0
        %1764 = vdwg.mxu0
        %v1765 = vmul.f32 %v1762, 0.5
        %v1766 = vmul.f32 %v1762, 0.044715
        %v1767 = vmul.f32 %v1766, %v1762
        %v1768 = vmul.f32 %v1767, %v1762
        %v1769 = vadd.f32 %v1762, %v1768
        %v1770 = vmul.f32 %v1769, 0.7978846
        %v1771 = vtanh.pop %v1770
        %v1772 = vadd.f32 %v1771, 1.0
        %v1773 = vmul.f32 %v1765, %v1772
        %v1774 = vpack.c.bf16 %v1773, %v1773
        %v1776 = vperm.slane %v1323, 0
        %v1786 = vunpack.c.l.b16 %v1315
        %v1787 = vunpack.c.l.b16 %v1316
        %v1788 = vunpack.c.l.b16 %v1317
        %v1789 = vunpack.c.l.b16 %v1318
        %v1790 = vunpack.c.l.b16 %v1319
        %v1791 = vunpack.c.l.b16 %v1320
        %v1792 = vunpack.c.l.b16 %v1321
        %v1793 = vunpack.c.l.b16 %v1322
        %v1794 = vpack.c.b16 %v1787, %v1786
        %v1795 = vpack.c.b16 %v1789, %v1788
        %v1796 = vpack.c.b16 %v1791, %v1790
        %v1797 = vpack.c.b16 %v1793, %v1792
        %v1803 = vsel %vm1278, %v1774, 0
        %1805 = vmatpush.bf16.msra.mxu0 0
        %1806 = vmatpush.bf16.msra.mxu0 0
        %1807 = vmatpush.bf16.msra.mxu0 0
        %1808 = vmatpush.bf16.msra.mxu0 0
        %1809 = vmatpush.bf16.msra.mxu0 %v1797
        %1810 = vmatpush.bf16.msra.mxu0 %v1796
        %1811 = vmatpush.bf16.msra.mxu0 %v1795
        %1812 = vmatpush.bf16.msra.mxu0 %v1794
        %1813 = vmatmul.bf16.gmra.mxu0 %v1803
        %v1814 = vpop.f32.mrf.mxu0
        %v1815 = vadd.f32 %v1776, %v1814
        %v1816 = vpop.f32.mrf.mxu0
        %1817 = vdwg.mxu0
        %v1818 = vadd.f32 %v1702, %v1815
        %1819 = vst.msk [vmem:[%s755] sm:$0xff] %vm790, %v1818
        %s1820 = sand.u32 %s577, 1
        %s1821 = scalar_lea.sflag [#allocation3], %s1820
        %s1822 = sand.u32 %s577, 1
        %s1823 = smul.addr %s1822, 8
        %s1824 = scalar_lea.vmem [#allocation2], %s1823
        // Predicated region
        $region121: #{vit_encoder.1} parent=119 // pred_check
          %p1825 = pneg %p587
        $region122: #{vit_encoder.1} parent=119 // pred_check_branch
          %1827 = sbr.rel (%p1825) target = $region124
        $region123: #{vit_encoder.1} parent=119 // pred_region
          %1829 = vsyncadd %s1821, 0
          %s1830 = smul.addr %s39, 8
          %s1831 = scalar_lea.hbm %s25, %s1830
          %s1833 = sshll.u32 %s1824, 4
          %s1834 = int_to_ptr.vmem [resolvable:$true] %s1833
          %s1835 = sshll.u32 %s1831, 4
          %s1836 = int_to_ptr.hbm [resolvable:$true] %s1835
          %1838 = dma.vmem_to_hbm [thread:$0]  %s1834, 128, %s1836, %s1821
        $region124: #{vit_encoder.1} parent=119 // pred_fallthru
          _
      $region120: #{vit_encoder.1} parent=5 // pred_fallthru
        _
      %p1839 = scmp.le.s32.totalorder 2, %s34
      // Predicated region
      $region125: #{vit_encoder.1} parent=5 // pred_check
        %p1840 = pneg %p1839
      $region126: #{vit_encoder.1} parent=5 // pred_check_branch
        %1842 = sbr.rel (%p1840) target = $region128
      $region127: #{vit_encoder.1} parent=5 // pred_region
        %s1843 = ssub.s32 %s34, 2
        // Predicated region
        $region129: #{vit_encoder.1} parent=127 // pred_check
          %p1844 = pneg %p593
        $region130: #{vit_encoder.1} parent=127 // pred_check_branch
          %1846 = sbr.rel (%p1844) target = $region132
        $region131: #{vit_encoder.1} parent=127 // pred_region
          %s1847 = sand.u32 %s578, 1
          %s1848 = scalar_lea.sflag [#allocation3], %s1847
          %s1849 = sand.u32 %s578, 1
          %s1850 = smul.addr %s1849, 8
          %s1851 = scalar_lea.vmem [#allocation2], %s1850
          %1853 = dma.done %s1848, 128
        $region132: #{vit_encoder.1} parent=127 // pred_fallthru
          _
      $region128: #{vit_encoder.1} parent=5 // pred_fallthru
        _
    $region6: #{vit_encoder.1} parent=1 // loop_footer
      %s38 = sadd.s32 1, %s34
    $region7: #{vit_encoder.1} parent=1 // loop_footer_branch
      %33 = sbr.rel target = $region3
    $region8: #{vit_encoder.1} parent=1 // loop_exit
      _
    %1854 = vsyncpa [#allocation3], 1
    %s1855 = scalar_lea.sflag [#allocation3], 1
    %1856 = vsyncpa %s1855, 1

</llo_original>
